<compile_context>
chip_gen: v7x
topology: tpu7x:2x2x1
jax: 0.10.0
libtpu: 0.0.40
codegen_flags: <defaults>
</compile_context>

<pallas_src>
import functools

import jax
import jax.numpy as jnp
from jax import lax
from jax.experimental import pallas as pl
from jax.experimental.pallas import tpu as pltpu


# ---------------------------------------------------------------------------
# Fused kernel: conv3x3+tanh -> conv3x3+relu -> conv3x3+relu.
# One grid step processes b_tile images; activations are (C_pad, b_tile*HW)
# with the flattened (image, pixel) axis lane-dense.
# ---------------------------------------------------------------------------
def _fused_isp_kernel(x_ref, m_ref, w1_ref, b1_ref, w2_ref, b2_ref,
                      w3_ref, b3_ref, o_ref, *, H, W, b_tile, dot_dtype):
    HW = H * W
    L = b_tile * HW
    masks = m_ref[...]                         # (8, L) f32, hoisted to wrapper

    def conv3x3(x, w_ref, b_ref, act):
        # x: (Cin_pad, L) f32; lane axis = b_tile images * HW pixels.
        pats = []
        mi = 0
        for dy in (-1, 0, 1):
            for dx in (-1, 0, 1):
                s = dy * W + dx                # flat-index shift of the tap
                if s == 0:
                    pats.append(x)             # center tap: always valid
                else:
                    # Circular lane rotate on the XLU; any wrap-around /
                    # cross-image / out-of-image tap is zeroed by the mask.
                    shifted = pltpu.roll(x, shift=(-s) % L, axis=1)
                    pats.append(shifted * masks[mi])
                    mi += 1
        mat = jnp.concatenate(pats, axis=0)    # (9*Cin_pad, L) im2col
        acc = lax.dot_general(
            w_ref[...].astype(dot_dtype), mat.astype(dot_dtype),
            dimension_numbers=(((1,), (0,)), ((), ())),
            preferred_element_type=jnp.float32)   # (Cout_pad, L)
        acc = acc + b_ref[...]                    # (Cout_pad, 1) broadcast
        if act == "tanh":
            return jnp.tanh(acc)
        return jnp.maximum(acc, 0.0)

    x = x_ref[0].astype(jnp.float32)               # (8, L), channels 4..7 == 0
    a1 = conv3x3(x, w1_ref, b1_ref, "tanh")        # (16, L)
    a2 = conv3x3(a1, w2_ref, b2_ref, "relu")       # (8, L), channels 4..7 == 0
    a3 = conv3x3(a2, w3_ref, b3_ref, "relu")       # (16, L), rows 12..15 == 0
    o_ref[0] = a3.astype(o_ref.dtype)


# ---------------------------------------------------------------------------
# Wrapper helpers.
# ---------------------------------------------------------------------------
def _pack_weight(w_oihw, cin_pad, cout_pad=None):
    """(O, I, 3, 3) -> (O_pad, 9*cin_pad); column = (ky*3+kx)*cin_pad + cin,
    zero-filled for padded input channels / output rows."""
    O, I, _, _ = w_oihw.shape
    w = jnp.transpose(w_oihw, (0, 2, 3, 1))                # (O, 3, 3, I)
    w = jnp.pad(w, ((0, 0), (0, 0), (0, 0), (0, cin_pad - I)))
    w = w.reshape(O, 9 * cin_pad)
    if cout_pad is not None and cout_pad > O:
        w = jnp.pad(w, ((0, cout_pad - O), (0, 0)))
    return w


def _tap_masks(H, W, b_tile):
    """(8, b_tile*HW) f32 validity masks for the 8 non-center 3x3 taps.
    Computed from p % HW so they also kill taps wrapping across images."""
    HW = H * W
    local = jnp.arange(b_tile * HW, dtype=jnp.int32) % HW
    hh = local // W
    ww = local % W
    rows = []
    for dy in (-1, 0, 1):
        for dx in (-1, 0, 1):
            if dy == 0 and dx == 0:
                continue
            valid = ((hh + dy >= 0) & (hh + dy < H) &
                     (ww + dx >= 0) & (ww + dx < W))
            rows.append(valid.astype(jnp.float32))
    return jnp.stack(rows, axis=0)


# ---------------------------------------------------------------------------
# Wrapper: parameter packing, pallas_call, pixel shuffle.
# ---------------------------------------------------------------------------
def robust_isp_forward(x_nchw, params, *, max_b_tile=64, use_bf16_dot=False):
    """x_nchw: (N, 4, H, W) float32. Returns (N, 3, 2H, 2W)."""
    (w1, b1), (w2, b2), (w3, b3) = params
    N, Cin, H, W = x_nchw.shape
    HW = H * W

    # Fold batch into the lane axis but keep grid length >= 2 so both v7x
    # TensorCores get work; on 1-TC chips the extra step costs ~0.35 us.
    b_tile = min(max(1, -(-N // 2)), max_b_tile)
    G = -(-N // b_tile)
    L = b_tile * HW

    # One-time parameter packing (hoist to param-load time in production).
    w1p = _pack_weight(w1, 8)                              # (16, 72)
    w2p = _pack_weight(w2, 16, cout_pad=8)                 # (8, 144)
    w3p = _pack_weight(w3, 8, cout_pad=16)                 # (16, 72), rows 12..15 = 0
    b1c = b1.reshape(-1, 1)                                # (16, 1)
    b2c = jnp.pad(b2, (0, 8 - b2.shape[0])).reshape(-1, 1)     # (8, 1)
    b3c = jnp.pad(b3, (0, 16 - b3.shape[0])).reshape(-1, 1)    # (16, 1)

    masks = _tap_masks(H, W, b_tile)                       # (8, L)

    # Input: (N,4,H,W) -> (G, 8, b_tile*HW); channels padded 4 -> 8 (zero
    # weights for pads) and batch padded to G*b_tile (discarded on output).
    x_flat = jnp.pad(x_nchw.reshape(N, Cin, HW),
                     ((0, G * b_tile - N), (0, 8 - Cin), (0, 0)))
    x_flat = (x_flat.reshape(G, b_tile, 8, HW)
                    .transpose(0, 2, 1, 3)
                    .reshape(G, 8, L))

    dot_dtype = jnp.bfloat16 if use_bf16_dot else jnp.float32
    kernel = functools.partial(_fused_isp_kernel, H=H, W=W, b_tile=b_tile,
                               dot_dtype=dot_dtype)
    # VMEM footprint per step ~ a few hundred KB at these sizes -- far below
    # even v7x's 64 MiB; re-derive b_tile / set vmem_limit_bytes if scaled up.
    y = pl.pallas_call(
        kernel,
        out_shape=jax.ShapeDtypeStruct((G, 16, L), x_nchw.dtype),
        grid=(G,),
        in_specs=[
            pl.BlockSpec((1, 8, L), lambda g: (g, 0, 0)),
            pl.BlockSpec(masks.shape, lambda g: (0, 0)),
            pl.BlockSpec(w1p.shape, lambda g: (0, 0)),
            pl.BlockSpec(b1c.shape, lambda g: (0, 0)),
            pl.BlockSpec(w2p.shape, lambda g: (0, 0)),
            pl.BlockSpec(b2c.shape, lambda g: (0, 0)),
            pl.BlockSpec(w3p.shape, lambda g: (0, 0)),
            pl.BlockSpec(b3c.shape, lambda g: (0, 0)),
        ],
        out_specs=pl.BlockSpec((1, 16, L), lambda g: (g, 0, 0)),
        compiler_params=pltpu.CompilerParams(
            dimension_semantics=("parallel",)),
    )(x_flat, masks, w1p, b1c, w2p, b2c, w3p, b3c)

    # Un-tile batch, drop padded images / output channels.
    c3 = (y.reshape(G, 16, b_tile, HW)
            .transpose(0, 2, 1, 3)
            .reshape(G * b_tile, 16, HW)[:N, :12]
            .reshape(N, 12, H, W))

    # pixel_shuffle(r=2): pure data movement on the small output.
    # TODO(synk): fold the 2x2 interleave into the kernel store (XLU rolls /
    # lane-strided blocks) if ever run at real ISP resolutions.
    c3 = c3.reshape(N, 3, 2, 2, H, W)
    return c3.transpose(0, 1, 4, 2, 5, 3).reshape(N, 3, 2 * H, 2 * W)


# ---------------------------------------------------------------------------
# Pure-JAX reference (for validation).
# ---------------------------------------------------------------------------
def _ref_conv(x, w_oihw, b):
    y = lax.conv_general_dilated(
        x, w_oihw, window_strides=(1, 1), padding="SAME",
        dimension_numbers=("NCHW", "OIHW", "NCHW"),
        precision=lax.Precision.HIGHEST)
    return y + b.reshape(1, -1, 1, 1)


def _pixel_shuffle_nchw(x, r):
    N, C, H, W = x.shape
    Co = C // (r * r)
    return (x.reshape(N, Co, r, r, H, W)
             .transpose(0, 1, 4, 2, 5, 3)
             .reshape(N, Co, H * r, W * r))


def ref_forward(x_nchw, params):
    (w1, b1), (w2, b2), (w3, b3) = params
    c1 = jnp.tanh(_ref_conv(x_nchw, w1, b1))
    c2 = jax.nn.relu(_ref_conv(c1, w2, b2))
    c3 = jax.nn.relu(_ref_conv(c2, w3, b3))
    return _pixel_shuffle_nchw(c3, 2)


# ---------------------------------------------------------------------------
if __name__ == "__main__":
    key = jax.random.PRNGKey(0)
    k_x, k1, k2, k3, kb1, kb2, kb3 = jax.random.split(key, 7)

    # N=4 exercises the batched-lane layout (b_tile=2 images per grid step,
    # grid of 2) while staying tiny.
    N, H, W = 4, 16, 16
    x = jax.random.normal(k_x, (N, 4, H, W), dtype=jnp.float32)

    # PyTorch OIHW conv weight shapes: 4->16 (tanh), 16->4 (relu), 4->12 (relu).
    params = (
        (jax.random.normal(k1, (16, 4, 3, 3), jnp.float32) * 0.1,
         jax.random.normal(kb1, (16,), jnp.float32) * 0.1),
        (jax.random.normal(k2, (4, 16, 3, 3), jnp.float32) * 0.1,
         jax.random.normal(kb2, (4,), jnp.float32) * 0.1),
        (jax.random.normal(k3, (12, 4, 3, 3), jnp.float32) * 0.1,
         jax.random.normal(kb3, (12,), jnp.float32) * 0.1),
    )

    out = jax.block_until_ready(robust_isp_forward(x, params))
    assert out.shape == (N, 3, 2 * H, 2 * W), out.shape

    ref = jax.block_until_ready(ref_forward(x, params))
    max_err = float(jnp.max(jnp.abs(out - ref)))
    assert jnp.allclose(out, ref, atol=1e-3, rtol=1e-3), max_err

    print("KERNEL_OK")
</pallas_src>

<mosaic_0001>
module attributes {stable_mosaic.version = 11 : i64} {
  func.func @_fused_isp_kernel(%arg0: i32, %arg1: memref<1x8x512xf32, #tpu.memory_space<vmem>>, %arg2: memref<8x512xf32, #tpu.memory_space<vmem>>, %arg3: memref<16x72xf32, #tpu.memory_space<vmem>>, %arg4: memref<16x1xf32, #tpu.memory_space<vmem>>, %arg5: memref<8x144xf32, #tpu.memory_space<vmem>>, %arg6: memref<8x1xf32, #tpu.memory_space<vmem>>, %arg7: memref<16x72xf32, #tpu.memory_space<vmem>>, %arg8: memref<16x1xf32, #tpu.memory_space<vmem>>, %arg9: memref<1x16x512xf32, #tpu.memory_space<vmem>>) attributes {dimension_semantics = [#tpu.dimension_semantics<parallel>], iteration_bounds = array<i64: 2>, scalar_prefetch = 0 : i64, scratch_operands = 0 : i64, tpu.core_type = #tpu.core_type<tc>, window_params = [{transform_indices = @transform_0, window_bounds = array<i64: 1, 8, 512>}, {pipeline_mode = #tpu.pipeline_mode<synchronous>, transform_indices = @transform_1, window_bounds = array<i64: 8, 512>}, {pipeline_mode = #tpu.pipeline_mode<synchronous>, transform_indices = @transform_2, window_bounds = array<i64: 16, 72>}, {pipeline_mode = #tpu.pipeline_mode<synchronous>, transform_indices = @transform_3, window_bounds = array<i64: 16, 1>}, {pipeline_mode = #tpu.pipeline_mode<synchronous>, transform_indices = @transform_4, window_bounds = array<i64: 8, 144>}, {pipeline_mode = #tpu.pipeline_mode<synchronous>, transform_indices = @transform_5, window_bounds = array<i64: 8, 1>}, {pipeline_mode = #tpu.pipeline_mode<synchronous>, transform_indices = @transform_6, window_bounds = array<i64: 16, 72>}, {pipeline_mode = #tpu.pipeline_mode<synchronous>, transform_indices = @transform_7, window_bounds = array<i64: 16, 1>}, {transform_indices = @transform_8, window_bounds = array<i64: 1, 16, 512>}]} {
    %c0 = arith.constant 0 : index
    %c0_0 = arith.constant 0 : index
    %0 = vector.load %arg2[%c0, %c0_0] : memref<8x512xf32, #tpu.memory_space<vmem>>, vector<8x512xf32>
    %c0_1 = arith.constant 0 : index
    %c0_2 = arith.constant 0 : index
    %c0_3 = arith.constant 0 : index
    %1 = vector.load %arg1[%c0_1, %c0_2, %c0_3] : memref<1x8x512xf32, #tpu.memory_space<vmem>>, vector<1x8x512xf32>
    %2 = vector.shape_cast %1 : vector<1x8x512xf32> to vector<8x512xf32>
    %c17_i32 = arith.constant 17 : i32
    %3 = tpu.dynamic_rotate %2 by %c17_i32 dim 1 : vector<8x512xf32>, i32 -> vector<8x512xf32>
    %4 = vector.extract_strided_slice %0 {offsets = [0, 0], sizes = [1, 512], strides = [1, 1]} : vector<8x512xf32> to vector<1x512xf32>
    %5 = vector.shape_cast %4 : vector<1x512xf32> to vector<512xf32>
    %6 = vector.shape_cast %5 : vector<512xf32> to vector<1x512xf32>
    %7 = vector.broadcast %6 : vector<1x512xf32> to vector<8x512xf32>
    %8 = arith.mulf %3, %7 : vector<8x512xf32>
    %c16_i32 = arith.constant 16 : i32
    %9 = tpu.dynamic_rotate %2 by %c16_i32 dim 1 : vector<8x512xf32>, i32 -> vector<8x512xf32>
    %10 = vector.extract_strided_slice %0 {offsets = [1, 0], sizes = [1, 512], strides = [1, 1]} : vector<8x512xf32> to vector<1x512xf32>
    %11 = vector.shape_cast %10 : vector<1x512xf32> to vector<512xf32>
    %12 = vector.shape_cast %11 : vector<512xf32> to vector<1x512xf32>
    %13 = vector.broadcast %12 : vector<1x512xf32> to vector<8x512xf32>
    %14 = arith.mulf %9, %13 : vector<8x512xf32>
    %c15_i32 = arith.constant 15 : i32
    %15 = tpu.dynamic_rotate %2 by %c15_i32 dim 1 : vector<8x512xf32>, i32 -> vector<8x512xf32>
    %16 = vector.extract_strided_slice %0 {offsets = [2, 0], sizes = [1, 512], strides = [1, 1]} : vector<8x512xf32> to vector<1x512xf32>
    %17 = vector.shape_cast %16 : vector<1x512xf32> to vector<512xf32>
    %18 = vector.shape_cast %17 : vector<512xf32> to vector<1x512xf32>
    %19 = vector.broadcast %18 : vector<1x512xf32> to vector<8x512xf32>
    %20 = arith.mulf %15, %19 : vector<8x512xf32>
    %c1_i32 = arith.constant 1 : i32
    %21 = tpu.dynamic_rotate %2 by %c1_i32 dim 1 : vector<8x512xf32>, i32 -> vector<8x512xf32>
    %22 = vector.extract_strided_slice %0 {offsets = [3, 0], sizes = [1, 512], strides = [1, 1]} : vector<8x512xf32> to vector<1x512xf32>
    %23 = vector.shape_cast %22 : vector<1x512xf32> to vector<512xf32>
    %24 = vector.shape_cast %23 : vector<512xf32> to vector<1x512xf32>
    %25 = vector.broadcast %24 : vector<1x512xf32> to vector<8x512xf32>
    %26 = arith.mulf %21, %25 : vector<8x512xf32>
    %c511_i32 = arith.constant 511 : i32
    %27 = tpu.dynamic_rotate %2 by %c511_i32 dim 1 : vector<8x512xf32>, i32 -> vector<8x512xf32>
    %28 = vector.extract_strided_slice %0 {offsets = [4, 0], sizes = [1, 512], strides = [1, 1]} : vector<8x512xf32> to vector<1x512xf32>
    %29 = vector.shape_cast %28 : vector<1x512xf32> to vector<512xf32>
    %30 = vector.shape_cast %29 : vector<512xf32> to vector<1x512xf32>
    %31 = vector.broadcast %30 : vector<1x512xf32> to vector<8x512xf32>
    %32 = arith.mulf %27, %31 : vector<8x512xf32>
    %c497_i32 = arith.constant 497 : i32
    %33 = tpu.dynamic_rotate %2 by %c497_i32 dim 1 : vector<8x512xf32>, i32 -> vector<8x512xf32>
    %34 = vector.extract_strided_slice %0 {offsets = [5, 0], sizes = [1, 512], strides = [1, 1]} : vector<8x512xf32> to vector<1x512xf32>
    %35 = vector.shape_cast %34 : vector<1x512xf32> to vector<512xf32>
    %36 = vector.shape_cast %35 : vector<512xf32> to vector<1x512xf32>
    %37 = vector.broadcast %36 : vector<1x512xf32> to vector<8x512xf32>
    %38 = arith.mulf %33, %37 : vector<8x512xf32>
    %c496_i32 = arith.constant 496 : i32
    %39 = tpu.dynamic_rotate %2 by %c496_i32 dim 1 : vector<8x512xf32>, i32 -> vector<8x512xf32>
    %40 = vector.extract_strided_slice %0 {offsets = [6, 0], sizes = [1, 512], strides = [1, 1]} : vector<8x512xf32> to vector<1x512xf32>
    %41 = vector.shape_cast %40 : vector<1x512xf32> to vector<512xf32>
    %42 = vector.shape_cast %41 : vector<512xf32> to vector<1x512xf32>
    %43 = vector.broadcast %42 : vector<1x512xf32> to vector<8x512xf32>
    %44 = arith.mulf %39, %43 : vector<8x512xf32>
    %c495_i32 = arith.constant 495 : i32
    %45 = tpu.dynamic_rotate %2 by %c495_i32 dim 1 : vector<8x512xf32>, i32 -> vector<8x512xf32>
    %46 = vector.extract_strided_slice %0 {offsets = [7, 0], sizes = [1, 512], strides = [1, 1]} : vector<8x512xf32> to vector<1x512xf32>
    %47 = vector.shape_cast %46 : vector<1x512xf32> to vector<512xf32>
    %48 = vector.shape_cast %47 : vector<512xf32> to vector<1x512xf32>
    %49 = vector.broadcast %48 : vector<1x512xf32> to vector<8x512xf32>
    %50 = arith.mulf %45, %49 : vector<8x512xf32>
    %51 = tpu.concatenate %8, %14, %20, %26, %2, %32, %38, %44, %50 in 0 : vector<8x512xf32>, vector<8x512xf32>, vector<8x512xf32>, vector<8x512xf32>, vector<8x512xf32>, vector<8x512xf32>, vector<8x512xf32>, vector<8x512xf32>, vector<8x512xf32> -> vector<72x512xf32>
    %c0_4 = arith.constant 0 : index
    %c0_5 = arith.constant 0 : index
    %52 = vector.load %arg3[%c0_4, %c0_5] : memref<16x72xf32, #tpu.memory_space<vmem>>, vector<16x72xf32>
    %cst = arith.constant dense<0.000000e+00> : vector<16x512xf32>
    %53 = tpu.matmul %52, %51, %cst {dimension_numbers = #tpu.dot_dimension_numbers<[1], [0], [0], [1], [0, 0, 1, 1], [], []>} : vector<16x72xf32>, vector<72x512xf32>, vector<16x512xf32> -> vector<16x512xf32>
    %c0_6 = arith.constant 0 : index
    %c0_7 = arith.constant 0 : index
    %54 = vector.load %arg4[%c0_6, %c0_7] : memref<16x1xf32, #tpu.memory_space<vmem>>, vector<16x1xf32>
    %55 = vector.broadcast %54 : vector<16x1xf32> to vector<16x512xf32>
    %56 = arith.addf %53, %55 : vector<16x512xf32>
    %57 = math.tanh %56 : vector<16x512xf32>
    %c17_i32_8 = arith.constant 17 : i32
    %58 = tpu.dynamic_rotate %57 by %c17_i32_8 dim 1 : vector<16x512xf32>, i32 -> vector<16x512xf32>
    %59 = vector.extract_strided_slice %0 {offsets = [0, 0], sizes = [1, 512], strides = [1, 1]} : vector<8x512xf32> to vector<1x512xf32>
    %60 = vector.shape_cast %59 : vector<1x512xf32> to vector<512xf32>
    %61 = vector.shape_cast %60 : vector<512xf32> to vector<1x512xf32>
    %62 = vector.broadcast %61 : vector<1x512xf32> to vector<16x512xf32>
    %63 = arith.mulf %58, %62 : vector<16x512xf32>
    %c16_i32_9 = arith.constant 16 : i32
    %64 = tpu.dynamic_rotate %57 by %c16_i32_9 dim 1 : vector<16x512xf32>, i32 -> vector<16x512xf32>
    %65 = vector.extract_strided_slice %0 {offsets = [1, 0], sizes = [1, 512], strides = [1, 1]} : vector<8x512xf32> to vector<1x512xf32>
    %66 = vector.shape_cast %65 : vector<1x512xf32> to vector<512xf32>
    %67 = vector.shape_cast %66 : vector<512xf32> to vector<1x512xf32>
    %68 = vector.broadcast %67 : vector<1x512xf32> to vector<16x512xf32>
    %69 = arith.mulf %64, %68 : vector<16x512xf32>
    %c15_i32_10 = arith.constant 15 : i32
    %70 = tpu.dynamic_rotate %57 by %c15_i32_10 dim 1 : vector<16x512xf32>, i32 -> vector<16x512xf32>
    %71 = vector.extract_strided_slice %0 {offsets = [2, 0], sizes = [1, 512], strides = [1, 1]} : vector<8x512xf32> to vector<1x512xf32>
    %72 = vector.shape_cast %71 : vector<1x512xf32> to vector<512xf32>
    %73 = vector.shape_cast %72 : vector<512xf32> to vector<1x512xf32>
    %74 = vector.broadcast %73 : vector<1x512xf32> to vector<16x512xf32>
    %75 = arith.mulf %70, %74 : vector<16x512xf32>
    %c1_i32_11 = arith.constant 1 : i32
    %76 = tpu.dynamic_rotate %57 by %c1_i32_11 dim 1 : vector<16x512xf32>, i32 -> vector<16x512xf32>
    %77 = vector.extract_strided_slice %0 {offsets = [3, 0], sizes = [1, 512], strides = [1, 1]} : vector<8x512xf32> to vector<1x512xf32>
    %78 = vector.shape_cast %77 : vector<1x512xf32> to vector<512xf32>
    %79 = vector.shape_cast %78 : vector<512xf32> to vector<1x512xf32>
    %80 = vector.broadcast %79 : vector<1x512xf32> to vector<16x512xf32>
    %81 = arith.mulf %76, %80 : vector<16x512xf32>
    %c511_i32_12 = arith.constant 511 : i32
    %82 = tpu.dynamic_rotate %57 by %c511_i32_12 dim 1 : vector<16x512xf32>, i32 -> vector<16x512xf32>
    %83 = vector.extract_strided_slice %0 {offsets = [4, 0], sizes = [1, 512], strides = [1, 1]} : vector<8x512xf32> to vector<1x512xf32>
    %84 = vector.shape_cast %83 : vector<1x512xf32> to vector<512xf32>
    %85 = vector.shape_cast %84 : vector<512xf32> to vector<1x512xf32>
    %86 = vector.broadcast %85 : vector<1x512xf32> to vector<16x512xf32>
    %87 = arith.mulf %82, %86 : vector<16x512xf32>
    %c497_i32_13 = arith.constant 497 : i32
    %88 = tpu.dynamic_rotate %57 by %c497_i32_13 dim 1 : vector<16x512xf32>, i32 -> vector<16x512xf32>
    %89 = vector.extract_strided_slice %0 {offsets = [5, 0], sizes = [1, 512], strides = [1, 1]} : vector<8x512xf32> to vector<1x512xf32>
    %90 = vector.shape_cast %89 : vector<1x512xf32> to vector<512xf32>
    %91 = vector.shape_cast %90 : vector<512xf32> to vector<1x512xf32>
    %92 = vector.broadcast %91 : vector<1x512xf32> to vector<16x512xf32>
    %93 = arith.mulf %88, %92 : vector<16x512xf32>
    %c496_i32_14 = arith.constant 496 : i32
    %94 = tpu.dynamic_rotate %57 by %c496_i32_14 dim 1 : vector<16x512xf32>, i32 -> vector<16x512xf32>
    %95 = vector.extract_strided_slice %0 {offsets = [6, 0], sizes = [1, 512], strides = [1, 1]} : vector<8x512xf32> to vector<1x512xf32>
    %96 = vector.shape_cast %95 : vector<1x512xf32> to vector<512xf32>
    %97 = vector.shape_cast %96 : vector<512xf32> to vector<1x512xf32>
    %98 = vector.broadcast %97 : vector<1x512xf32> to vector<16x512xf32>
    %99 = arith.mulf %94, %98 : vector<16x512xf32>
    %c495_i32_15 = arith.constant 495 : i32
    %100 = tpu.dynamic_rotate %57 by %c495_i32_15 dim 1 : vector<16x512xf32>, i32 -> vector<16x512xf32>
    %101 = vector.extract_strided_slice %0 {offsets = [7, 0], sizes = [1, 512], strides = [1, 1]} : vector<8x512xf32> to vector<1x512xf32>
    %102 = vector.shape_cast %101 : vector<1x512xf32> to vector<512xf32>
    %103 = vector.shape_cast %102 : vector<512xf32> to vector<1x512xf32>
    %104 = vector.broadcast %103 : vector<1x512xf32> to vector<16x512xf32>
    %105 = arith.mulf %100, %104 : vector<16x512xf32>
    %106 = tpu.concatenate %63, %69, %75, %81, %57, %87, %93, %99, %105 in 0 : vector<16x512xf32>, vector<16x512xf32>, vector<16x512xf32>, vector<16x512xf32>, vector<16x512xf32>, vector<16x512xf32>, vector<16x512xf32>, vector<16x512xf32>, vector<16x512xf32> -> vector<144x512xf32>
    %c0_16 = arith.constant 0 : index
    %c0_17 = arith.constant 0 : index
    %107 = vector.load %arg5[%c0_16, %c0_17] : memref<8x144xf32, #tpu.memory_space<vmem>>, vector<8x144xf32>
    %cst_18 = arith.constant dense<0.000000e+00> : vector<8x512xf32>
    %108 = tpu.matmul %107, %106, %cst_18 {dimension_numbers = #tpu.dot_dimension_numbers<[1], [0], [0], [1], [0, 0, 1, 1], [], []>} : vector<8x144xf32>, vector<144x512xf32>, vector<8x512xf32> -> vector<8x512xf32>
    %c0_19 = arith.constant 0 : index
    %c0_20 = arith.constant 0 : index
    %109 = vector.load %arg6[%c0_19, %c0_20] : memref<8x1xf32, #tpu.memory_space<vmem>>, vector<8x1xf32>
    %110 = vector.broadcast %109 : vector<8x1xf32> to vector<8x512xf32>
    %111 = arith.addf %108, %110 : vector<8x512xf32>
    %cst_21 = arith.constant 0.000000e+00 : f32
    %112 = vector.broadcast %cst_21 : f32 to vector<8x512xf32>
    %113 = arith.maximumf %111, %112 : vector<8x512xf32>
    %c17_i32_22 = arith.constant 17 : i32
    %114 = tpu.dynamic_rotate %113 by %c17_i32_22 dim 1 : vector<8x512xf32>, i32 -> vector<8x512xf32>
    %115 = vector.extract_strided_slice %0 {offsets = [0, 0], sizes = [1, 512], strides = [1, 1]} : vector<8x512xf32> to vector<1x512xf32>
    %116 = vector.shape_cast %115 : vector<1x512xf32> to vector<512xf32>
    %117 = vector.shape_cast %116 : vector<512xf32> to vector<1x512xf32>
    %118 = vector.broadcast %117 : vector<1x512xf32> to vector<8x512xf32>
    %119 = arith.mulf %114, %118 : vector<8x512xf32>
    %c16_i32_23 = arith.constant 16 : i32
    %120 = tpu.dynamic_rotate %113 by %c16_i32_23 dim 1 : vector<8x512xf32>, i32 -> vector<8x512xf32>
    %121 = vector.extract_strided_slice %0 {offsets = [1, 0], sizes = [1, 512], strides = [1, 1]} : vector<8x512xf32> to vector<1x512xf32>
    %122 = vector.shape_cast %121 : vector<1x512xf32> to vector<512xf32>
    %123 = vector.shape_cast %122 : vector<512xf32> to vector<1x512xf32>
    %124 = vector.broadcast %123 : vector<1x512xf32> to vector<8x512xf32>
    %125 = arith.mulf %120, %124 : vector<8x512xf32>
    %c15_i32_24 = arith.constant 15 : i32
    %126 = tpu.dynamic_rotate %113 by %c15_i32_24 dim 1 : vector<8x512xf32>, i32 -> vector<8x512xf32>
    %127 = vector.extract_strided_slice %0 {offsets = [2, 0], sizes = [1, 512], strides = [1, 1]} : vector<8x512xf32> to vector<1x512xf32>
    %128 = vector.shape_cast %127 : vector<1x512xf32> to vector<512xf32>
    %129 = vector.shape_cast %128 : vector<512xf32> to vector<1x512xf32>
    %130 = vector.broadcast %129 : vector<1x512xf32> to vector<8x512xf32>
    %131 = arith.mulf %126, %130 : vector<8x512xf32>
    %c1_i32_25 = arith.constant 1 : i32
    %132 = tpu.dynamic_rotate %113 by %c1_i32_25 dim 1 : vector<8x512xf32>, i32 -> vector<8x512xf32>
    %133 = vector.extract_strided_slice %0 {offsets = [3, 0], sizes = [1, 512], strides = [1, 1]} : vector<8x512xf32> to vector<1x512xf32>
    %134 = vector.shape_cast %133 : vector<1x512xf32> to vector<512xf32>
    %135 = vector.shape_cast %134 : vector<512xf32> to vector<1x512xf32>
    %136 = vector.broadcast %135 : vector<1x512xf32> to vector<8x512xf32>
    %137 = arith.mulf %132, %136 : vector<8x512xf32>
    %c511_i32_26 = arith.constant 511 : i32
    %138 = tpu.dynamic_rotate %113 by %c511_i32_26 dim 1 : vector<8x512xf32>, i32 -> vector<8x512xf32>
    %139 = vector.extract_strided_slice %0 {offsets = [4, 0], sizes = [1, 512], strides = [1, 1]} : vector<8x512xf32> to vector<1x512xf32>
    %140 = vector.shape_cast %139 : vector<1x512xf32> to vector<512xf32>
    %141 = vector.shape_cast %140 : vector<512xf32> to vector<1x512xf32>
    %142 = vector.broadcast %141 : vector<1x512xf32> to vector<8x512xf32>
    %143 = arith.mulf %138, %142 : vector<8x512xf32>
    %c497_i32_27 = arith.constant 497 : i32
    %144 = tpu.dynamic_rotate %113 by %c497_i32_27 dim 1 : vector<8x512xf32>, i32 -> vector<8x512xf32>
    %145 = vector.extract_strided_slice %0 {offsets = [5, 0], sizes = [1, 512], strides = [1, 1]} : vector<8x512xf32> to vector<1x512xf32>
    %146 = vector.shape_cast %145 : vector<1x512xf32> to vector<512xf32>
    %147 = vector.shape_cast %146 : vector<512xf32> to vector<1x512xf32>
    %148 = vector.broadcast %147 : vector<1x512xf32> to vector<8x512xf32>
    %149 = arith.mulf %144, %148 : vector<8x512xf32>
    %c496_i32_28 = arith.constant 496 : i32
    %150 = tpu.dynamic_rotate %113 by %c496_i32_28 dim 1 : vector<8x512xf32>, i32 -> vector<8x512xf32>
    %151 = vector.extract_strided_slice %0 {offsets = [6, 0], sizes = [1, 512], strides = [1, 1]} : vector<8x512xf32> to vector<1x512xf32>
    %152 = vector.shape_cast %151 : vector<1x512xf32> to vector<512xf32>
    %153 = vector.shape_cast %152 : vector<512xf32> to vector<1x512xf32>
    %154 = vector.broadcast %153 : vector<1x512xf32> to vector<8x512xf32>
    %155 = arith.mulf %150, %154 : vector<8x512xf32>
    %c495_i32_29 = arith.constant 495 : i32
    %156 = tpu.dynamic_rotate %113 by %c495_i32_29 dim 1 : vector<8x512xf32>, i32 -> vector<8x512xf32>
    %157 = vector.extract_strided_slice %0 {offsets = [7, 0], sizes = [1, 512], strides = [1, 1]} : vector<8x512xf32> to vector<1x512xf32>
    %158 = vector.shape_cast %157 : vector<1x512xf32> to vector<512xf32>
    %159 = vector.shape_cast %158 : vector<512xf32> to vector<1x512xf32>
    %160 = vector.broadcast %159 : vector<1x512xf32> to vector<8x512xf32>
    %161 = arith.mulf %156, %160 : vector<8x512xf32>
    %162 = tpu.concatenate %119, %125, %131, %137, %113, %143, %149, %155, %161 in 0 : vector<8x512xf32>, vector<8x512xf32>, vector<8x512xf32>, vector<8x512xf32>, vector<8x512xf32>, vector<8x512xf32>, vector<8x512xf32>, vector<8x512xf32>, vector<8x512xf32> -> vector<72x512xf32>
    %c0_30 = arith.constant 0 : index
    %c0_31 = arith.constant 0 : index
    %163 = vector.load %arg7[%c0_30, %c0_31] : memref<16x72xf32, #tpu.memory_space<vmem>>, vector<16x72xf32>
    %cst_32 = arith.constant dense<0.000000e+00> : vector<16x512xf32>
    %164 = tpu.matmul %163, %162, %cst_32 {dimension_numbers = #tpu.dot_dimension_numbers<[1], [0], [0], [1], [0, 0, 1, 1], [], []>} : vector<16x72xf32>, vector<72x512xf32>, vector<16x512xf32> -> vector<16x512xf32>
    %c0_33 = arith.constant 0 : index
    %c0_34 = arith.constant 0 : index
    %165 = vector.load %arg8[%c0_33, %c0_34] : memref<16x1xf32, #tpu.memory_space<vmem>>, vector<16x1xf32>
    %166 = vector.broadcast %165 : vector<16x1xf32> to vector<16x512xf32>
    %167 = arith.addf %164, %166 : vector<16x512xf32>
    %cst_35 = arith.constant 0.000000e+00 : f32
    %168 = vector.broadcast %cst_35 : f32 to vector<16x512xf32>
    %169 = arith.maximumf %167, %168 : vector<16x512xf32>
    %c0_36 = arith.constant 0 : index
    %c0_37 = arith.constant 0 : index
    %c0_38 = arith.constant 0 : index
    %170 = vector.load %arg9[%c0_36, %c0_37, %c0_38] : memref<1x16x512xf32, #tpu.memory_space<vmem>>, vector<1x16x512xf32>
    %171 = vector.shape_cast %170 : vector<1x16x512xf32> to vector<16x512xf32>
    %172 = vector.shape_cast %169 : vector<16x512xf32> to vector<1x16x512xf32>
    tpu.vector_store %arg9[%c0_36, %c0_37, %c0_38], %172 {strides = array<i32>} : memref<1x16x512xf32, #tpu.memory_space<vmem>>, vector<1x16x512xf32>,
    return
  }
  func.func @transform_0(%arg0: i32) -> (i32, i32, i32) {
    %c0_i32 = arith.constant 0 : i32
    %c0_i32_0 = arith.constant 0 : i32
    %c0_i32_1 = arith.constant 0 : i32
    return %arg0, %c0_i32, %c0_i32_0 : i32, i32, i32
  }
  func.func @transform_1(%arg0: i32) -> (i32, i32) {
    %c0_i32 = arith.constant 0 : i32
    %c0_i32_0 = arith.constant 0 : i32
    %c0_i32_1 = arith.constant 0 : i32
    return %c0_i32, %c0_i32_0 : i32, i32
  }
  func.func @transform_2(%arg0: i32) -> (i32, i32) {
    %c0_i32 = arith.constant 0 : i32
    %c0_i32_0 = arith.constant 0 : i32
    %c0_i32_1 = arith.constant 0 : i32
    return %c0_i32, %c0_i32_0 : i32, i32
  }
  func.func @transform_3(%arg0: i32) -> (i32, i32) {
    %c0_i32 = arith.constant 0 : i32
    %c0_i32_0 = arith.constant 0 : i32
    %c0_i32_1 = arith.constant 0 : i32
    return %c0_i32, %c0_i32_0 : i32, i32
  }
  func.func @transform_4(%arg0: i32) -> (i32, i32) {
    %c0_i32 = arith.constant 0 : i32
    %c0_i32_0 = arith.constant 0 : i32
    %c0_i32_1 = arith.constant 0 : i32
    return %c0_i32, %c0_i32_0 : i32, i32
  }
  func.func @transform_5(%arg0: i32) -> (i32, i32) {
    %c0_i32 = arith.constant 0 : i32
    %c0_i32_0 = arith.constant 0 : i32
    %c0_i32_1 = arith.constant 0 : i32
    return %c0_i32, %c0_i32_0 : i32, i32
  }
  func.func @transform_6(%arg0: i32) -> (i32, i32) {
    %c0_i32 = arith.constant 0 : i32
    %c0_i32_0 = arith.constant 0 : i32
    %c0_i32_1 = arith.constant 0 : i32
    return %c0_i32, %c0_i32_0 : i32, i32
  }
  func.func @transform_7(%arg0: i32) -> (i32, i32) {
    %c0_i32 = arith.constant 0 : i32
    %c0_i32_0 = arith.constant 0 : i32
    %c0_i32_1 = arith.constant 0 : i32
    return %c0_i32, %c0_i32_0 : i32, i32
  }
  func.func @transform_8(%arg0: i32) -> (i32, i32, i32) {
    %c0_i32 = arith.constant 0 : i32
    %c0_i32_0 = arith.constant 0 : i32
    %c0_i32_1 = arith.constant 0 : i32
    return %arg0, %c0_i32, %c0_i32_0 : i32, i32, i32
  }
}

</mosaic_0001>

<llo_original>
// kernel: tpu_custom_call.1
$region0: #{tpu_custom_call.1}
  #allocation0 [shape = 'u32[]', space=smem, size = 0x4, offset = 0x4, fixed_abs, tag = 'smem constant byte address 0x4 - core index']
  #allocation1 [shape = 'u32[144,128]{1,0:T(1,128)}', space=vmem, size = 0x12000, scoped, tag = 'internal scratch']
  %s0 = inlined_call_operand.hbm [shape: f32[2,8,512], index: 0, kind: input, shape index: {}]
  %s1 = inlined_call_operand.vmem [shape: f32[8,512], index: 1, kind: input, shape index: {}]
  %s2 = inlined_call_operand.vmem [shape: f32[16,72], index: 2, kind: input, shape index: {}]
  %s3 = inlined_call_operand.vmem [shape: f32[16,1], index: 3, kind: input, shape index: {}]
  %s4 = inlined_call_operand.hbm [shape: f32[8,144], index: 4, kind: input, shape index: {}]
  %s5 = inlined_call_operand.vmem [shape: f32[8,1], index: 5, kind: input, shape index: {}]
  %s6 = inlined_call_operand.vmem [shape: f32[16,72], index: 6, kind: input, shape index: {}]
  %s7 = inlined_call_operand.vmem [shape: f32[16,1], index: 7, kind: input, shape index: {}]
  %s8 = inlined_call_operand.hbm [shape: f32[2,16,512], index: 8, kind: output, shape index: {}]
  %s9 = sld [smem:[#allocation0]]
  $region73: #{tpu_custom_call.1} parent=0
    _
  %s11 = ssub.s32 1, %s9
  %s12 = scalar_select 0, %s11, %s9
  $region1: #{tpu_custom_call.1} parent=0
    #allocation2 [shape = 'u8[32768]{0}', space=vmem, size = 0x8000, scoped, tag = 'input window, operand 0']
    #allocation3 [shape = 's32[2]{0}', space=sflag, size = 0x8, scoped, tag = 'scoped memory for tpu_custom_call.1']
    #allocation4 [shape = 's32[2]{0}', space=sflag, size = 0x8, scoped, tag = 'scoped memory for tpu_custom_call.1']
    #allocation5 [shape = 'u8[8192]{0}', space=vmem, size = 0x2000, scoped, tag = 'input window, operand 4, single buffered']
    #allocation6 [shape = 's32[1]{0}', space=sflag, size = 0x4, scoped, tag = 'scoped memory for tpu_custom_call.1']
    #allocation7 [shape = 'u8[65536]{0}', space=vmem, size = 0x10000, scoped, tag = 'output window, operand 0']
    %13 = vsyncpa [#allocation3], 0
    %s14 = scalar_lea.sflag [#allocation3], 1
    %15 = vsyncpa %s14, 0
    %16 = vsyncpa [#allocation6], 0
    %17 = vsyncpa [#allocation4], 0
    %s18 = scalar_lea.sflag [#allocation4], 1
    %19 = vsyncpa %s18, 0
    loop: start=0, step=1, limit=4
    $region2: #{tpu_custom_call.1} parent=1 // loop_pre_header
      _
    $region3: #{tpu_custom_call.1} parent=1 // loop_header
      %s21 = sphi 0, %s25
      %p22 = scmp.ge.s32.totalorder %s21, 4
      %s31 = sphi 0, %s33
      %s34 = sphi 0, %s31
      %s35 = sphi 0, %s34
      %s51 = sphi 0, %s35
      %s55 = sphi 0, %s55
      %s57 = sphi 0, %s55
      %s58 = sphi 0, %s57
      %s72 = sphi 0, %s58
      %s76 = sphi 0, %s76
      %s78 = sphi 0, %s76
      %s79 = sphi 0, %s78
      %s93 = sphi 0, %s79
      %s97 = sphi 0, %s97
      %s99 = sphi 0, %s97
      %s100 = sphi 0, %s99
      %s114 = sphi 0, %s100
      %s118 = sphi 0, %s118
      %s120 = sphi 0, %s118
      %s121 = sphi 0, %s120
      %s135 = sphi 0, %s121
      %s139 = sphi 0, %s139
      %s141 = sphi 0, %s139
      %s142 = sphi 0, %s141
      %s156 = sphi 0, %s142
      %s160 = sphi 0, %s160
      %s162 = sphi 0, %s160
      %s163 = sphi 0, %s162
      %s177 = sphi 0, %s163
      %s181 = sphi 0, %s181
      %s183 = sphi 0, %s181
      %s184 = sphi 0, %s183
      %s198 = sphi 0, %s184
      %s204 = sphi 0, %s206
      %s207 = sphi 0, %s204
      %s208 = sphi 0, %s207
      %s224 = sphi 0, %s208
    $region4: #{tpu_custom_call.1} parent=1 // loop_header_branch
      %24 = sbr.rel (%p22) target = $region8
    $region5: #{tpu_custom_call.1} parent=1 // loop_body
      %s26 = ssub.s32 %s21, 1
      %s27 = ssub.s32 %s21, 2
      %s28 = sadd.s32 %s21, 1
      %s29 = ssub.s32 %s21, %s28
      %p30 = scmp.eq.s32.totalorder %s29, 0
      %s32 = sadd.s32 %s31, 1
      %s33 = scalar_select %p30, %s31, %s32
      %p36 = pneg %p30
      %p37 = scmp.eq.s32.totalorder %s21, 1
      %p38 = por %p36, %p37
      %p39 = scmp.ne.s32.totalorder %s31, %s34
      %p40 = scmp.eq.s32.totalorder %s21, 0
      %p41 = por %p39, %p40
      %p42 = scmp.ne.s32.totalorder %s31, %s34
      %p43 = scmp.eq.s32.totalorder %s26, 1
      %p44 = por %p42, %p43
      %p45 = scmp.ne.s32.totalorder %s34, %s35
      %p46 = scmp.eq.s32.totalorder %s26, 0
      %p47 = por %p45, %p46
      %p48 = scmp.ne.s32.totalorder %s34, %s35
      %p49 = scmp.eq.s32.totalorder %s27, 1
      %p50 = por %p48, %p49
      %p52 = scmp.ne.s32.totalorder %s35, %s51
      %p53 = scmp.eq.s32.totalorder %s27, 0
      %p54 = por %p52, %p53
      %s56 = sadd.s32 %s55, 1
      %p59 = scmp.eq.s32.totalorder %s21, 1
      %p60 = scmp.ne.s32.totalorder %s55, %s57
      %p61 = scmp.eq.s32.totalorder %s21, 0
      %p62 = por %p60, %p61
      %p63 = scmp.ne.s32.totalorder %s55, %s57
      %p64 = scmp.eq.s32.totalorder %s26, 1
      %p65 = por %p63, %p64
      %p66 = scmp.ne.s32.totalorder %s57, %s58
      %p67 = scmp.eq.s32.totalorder %s26, 0
      %p68 = por %p66, %p67
      %p69 = scmp.ne.s32.totalorder %s57, %s58
      %p70 = scmp.eq.s32.totalorder %s27, 1
      %p71 = por %p69, %p70
      %p73 = scmp.ne.s32.totalorder %s58, %s72
      %p74 = scmp.eq.s32.totalorder %s27, 0
      %p75 = por %p73, %p74
      %s77 = sadd.s32 %s76, 1
      %p80 = scmp.eq.s32.totalorder %s21, 1
      %p81 = scmp.ne.s32.totalorder %s76, %s78
      %p82 = scmp.eq.s32.totalorder %s21, 0
      %p83 = por %p81, %p82
      %p84 = scmp.ne.s32.totalorder %s76, %s78
      %p85 = scmp.eq.s32.totalorder %s26, 1
      %p86 = por %p84, %p85
      %p87 = scmp.ne.s32.totalorder %s78, %s79
      %p88 = scmp.eq.s32.totalorder %s26, 0
      %p89 = por %p87, %p88
      %p90 = scmp.ne.s32.totalorder %s78, %s79
      %p91 = scmp.eq.s32.totalorder %s27, 1
      %p92 = por %p90, %p91
      %p94 = scmp.ne.s32.totalorder %s79, %s93
      %p95 = scmp.eq.s32.totalorder %s27, 0
      %p96 = por %p94, %p95
      %s98 = sadd.s32 %s97, 1
      %p101 = scmp.eq.s32.totalorder %s21, 1
      %p102 = scmp.ne.s32.totalorder %s97, %s99
      %p103 = scmp.eq.s32.totalorder %s21, 0
      %p104 = por %p102, %p103
      %p105 = scmp.ne.s32.totalorder %s97, %s99
      %p106 = scmp.eq.s32.totalorder %s26, 1
      %p107 = por %p105, %p106
      %p108 = scmp.ne.s32.totalorder %s99, %s100
      %p109 = scmp.eq.s32.totalorder %s26, 0
      %p110 = por %p108, %p109
      %p111 = scmp.ne.s32.totalorder %s99, %s100
      %p112 = scmp.eq.s32.totalorder %s27, 1
      %p113 = por %p111, %p112
      %p115 = scmp.ne.s32.totalorder %s100, %s114
      %p116 = scmp.eq.s32.totalorder %s27, 0
      %p117 = por %p115, %p116
      %s119 = sadd.s32 %s118, 1
      %p122 = scmp.eq.s32.totalorder %s21, 1
      %p123 = scmp.ne.s32.totalorder %s118, %s120
      %p124 = scmp.eq.s32.totalorder %s21, 0
      %p125 = por %p123, %p124
      %p126 = scmp.ne.s32.totalorder %s118, %s120
      %p127 = scmp.eq.s32.totalorder %s26, 1
      %p128 = por %p126, %p127
      %p129 = scmp.ne.s32.totalorder %s120, %s121
      %p130 = scmp.eq.s32.totalorder %s26, 0
      %p131 = por %p129, %p130
      %p132 = scmp.ne.s32.totalorder %s120, %s121
      %p133 = scmp.eq.s32.totalorder %s27, 1
      %p134 = por %p132, %p133
      %p136 = scmp.ne.s32.totalorder %s121, %s135
      %p137 = scmp.eq.s32.totalorder %s27, 0
      %p138 = por %p136, %p137
      %s140 = sadd.s32 %s139, 1
      %p143 = scmp.eq.s32.totalorder %s21, 1
      %p144 = scmp.ne.s32.totalorder %s139, %s141
      %p145 = scmp.eq.s32.totalorder %s21, 0
      %p146 = por %p144, %p145
      %p147 = scmp.ne.s32.totalorder %s139, %s141
      %p148 = scmp.eq.s32.totalorder %s26, 1
      %p149 = por %p147, %p148
      %p150 = scmp.ne.s32.totalorder %s141, %s142
      %p151 = scmp.eq.s32.totalorder %s26, 0
      %p152 = por %p150, %p151
      %p153 = scmp.ne.s32.totalorder %s141, %s142
      %p154 = scmp.eq.s32.totalorder %s27, 1
      %p155 = por %p153, %p154
      %p157 = scmp.ne.s32.totalorder %s142, %s156
      %p158 = scmp.eq.s32.totalorder %s27, 0
      %p159 = por %p157, %p158
      %s161 = sadd.s32 %s160, 1
      %p164 = scmp.eq.s32.totalorder %s21, 1
      %p165 = scmp.ne.s32.totalorder %s160, %s162
      %p166 = scmp.eq.s32.totalorder %s21, 0
      %p167 = por %p165, %p166
      %p168 = scmp.ne.s32.totalorder %s160, %s162
      %p169 = scmp.eq.s32.totalorder %s26, 1
      %p170 = por %p168, %p169
      %p171 = scmp.ne.s32.totalorder %s162, %s163
      %p172 = scmp.eq.s32.totalorder %s26, 0
      %p173 = por %p171, %p172
      %p174 = scmp.ne.s32.totalorder %s162, %s163
      %p175 = scmp.eq.s32.totalorder %s27, 1
      %p176 = por %p174, %p175
      %p178 = scmp.ne.s32.totalorder %s163, %s177
      %p179 = scmp.eq.s32.totalorder %s27, 0
      %p180 = por %p178, %p179
      %s182 = sadd.s32 %s181, 1
      %p185 = scmp.eq.s32.totalorder %s21, 1
      %p186 = scmp.ne.s32.totalorder %s181, %s183
      %p187 = scmp.eq.s32.totalorder %s21, 0
      %p188 = por %p186, %p187
      %p189 = scmp.ne.s32.totalorder %s181, %s183
      %p190 = scmp.eq.s32.totalorder %s26, 1
      %p191 = por %p189, %p190
      %p192 = scmp.ne.s32.totalorder %s183, %s184
      %p193 = scmp.eq.s32.totalorder %s26, 0
      %p194 = por %p192, %p193
      %p195 = scmp.ne.s32.totalorder %s183, %s184
      %p196 = scmp.eq.s32.totalorder %s27, 1
      %p197 = por %p195, %p196
      %p199 = scmp.ne.s32.totalorder %s184, %s198
      %p200 = scmp.eq.s32.totalorder %s27, 0
      %p201 = por %p199, %p200
      %s202 = ssub.s32 %s21, %s28
      %p203 = scmp.eq.s32.totalorder %s202, 0
      %s205 = sadd.s32 %s204, 1
      %s206 = scalar_select %p203, %s204, %s205
      %p209 = pneg %p203
      %p210 = scmp.eq.s32.totalorder %s21, 1
      %p211 = por %p209, %p210
      %p212 = scmp.ne.s32.totalorder %s204, %s207
      %p213 = scmp.eq.s32.totalorder %s21, 0
      %p214 = por %p212, %p213
      %p215 = scmp.ne.s32.totalorder %s204, %s207
      %p216 = scmp.eq.s32.totalorder %s26, 1
      %p217 = por %p215, %p216
      %p218 = scmp.ne.s32.totalorder %s207, %s208
      %p219 = scmp.eq.s32.totalorder %s26, 0
      %p220 = por %p218, %p219
      %p221 = scmp.ne.s32.totalorder %s207, %s208
      %p222 = scmp.eq.s32.totalorder %s27, 1
      %p223 = por %p221, %p222
      %p225 = scmp.ne.s32.totalorder %s208, %s224
      %p226 = scmp.eq.s32.totalorder %s27, 0
      %p227 = por %p225, %p226
      %p228 = scmp.le.s32.totalorder 1, %s21
      %p229 = scmp.lt.s32.totalorder %s21, 3
      %p230 = pnand %p228, %p229
      %p231 = pneg %p230
      // Predicated region
      $region9: #{tpu_custom_call.1} parent=5 // pred_check
        _
      $region10: #{tpu_custom_call.1} parent=5 // pred_check_branch
        %233 = sbr.rel (%p230) target = $region12
      $region11: #{tpu_custom_call.1} parent=5 // pred_region
        %s234 = ssub.s32 %s21, 1
        // Predicated region
        $region13: #{tpu_custom_call.1} parent=11 // pred_check
          %p235 = pneg %p68
        $region14: #{tpu_custom_call.1} parent=11 // pred_check_branch
          %237 = sbr.rel (%p235) target = $region16
        $region15: #{tpu_custom_call.1} parent=11 // pred_region
          _
        $region16: #{tpu_custom_call.1} parent=11 // pred_fallthru
          _
        // Predicated region
        $region17: #{tpu_custom_call.1} parent=11 // pred_check
          %p238 = pneg %p89
        $region18: #{tpu_custom_call.1} parent=11 // pred_check_branch
          %240 = sbr.rel (%p238) target = $region20
        $region19: #{tpu_custom_call.1} parent=11 // pred_region
          _
        $region20: #{tpu_custom_call.1} parent=11 // pred_fallthru
          _
        // Predicated region
        $region21: #{tpu_custom_call.1} parent=11 // pred_check
          %p241 = pneg %p110
        $region22: #{tpu_custom_call.1} parent=11 // pred_check_branch
          %243 = sbr.rel (%p241) target = $region24
        $region23: #{tpu_custom_call.1} parent=11 // pred_region
          _
        $region24: #{tpu_custom_call.1} parent=11 // pred_fallthru
          _
        // Predicated region
        $region25: #{tpu_custom_call.1} parent=11 // pred_check
          %p244 = pneg %p131
        $region26: #{tpu_custom_call.1} parent=11 // pred_check_branch
          %246 = sbr.rel (%p244) target = $region28
        $region27: #{tpu_custom_call.1} parent=11 // pred_region
          %s248 = ssub.s32 256, 256
          %249 = vsyncadd [#allocation6], %s248
          %s251 = sshll.u32 [#allocation5], 4
          %s252 = int_to_ptr.vmem [resolvable:$true] %s251
          %254 = dma.hbm_to_vmem [thread:$0]  %s4, 256, %s252, [#allocation6]
        $region28: #{tpu_custom_call.1} parent=11 // pred_fallthru
          _
        // Predicated region
        $region29: #{tpu_custom_call.1} parent=11 // pred_check
          %p255 = pneg %p152
        $region30: #{tpu_custom_call.1} parent=11 // pred_check_branch
          %257 = sbr.rel (%p255) target = $region32
        $region31: #{tpu_custom_call.1} parent=11 // pred_region
          _
        $region32: #{tpu_custom_call.1} parent=11 // pred_fallthru
          _
        // Predicated region
        $region33: #{tpu_custom_call.1} parent=11 // pred_check
          %p258 = pneg %p173
        $region34: #{tpu_custom_call.1} parent=11 // pred_check_branch
          %260 = sbr.rel (%p258) target = $region36
        $region35: #{tpu_custom_call.1} parent=11 // pred_region
          _
        $region36: #{tpu_custom_call.1} parent=11 // pred_fallthru
          _
        // Predicated region
        $region37: #{tpu_custom_call.1} parent=11 // pred_check
          %p261 = pneg %p194
        $region38: #{tpu_custom_call.1} parent=11 // pred_check_branch
          %263 = sbr.rel (%p261) target = $region40
        $region39: #{tpu_custom_call.1} parent=11 // pred_region
          _
        $region40: #{tpu_custom_call.1} parent=11 // pred_fallthru
          _
      $region12: #{tpu_custom_call.1} parent=5 // pred_fallthru
        _
      %p264 = scmp.lt.s32.totalorder %s21, 2
      // Predicated region
      $region41: #{tpu_custom_call.1} parent=5 // pred_check
        %p265 = pneg %p264
      $region42: #{tpu_custom_call.1} parent=5 // pred_check_branch
        %267 = sbr.rel (%p265) target = $region44
      $region43: #{tpu_custom_call.1} parent=5 // pred_region
        // Predicated region
        $region45: #{tpu_custom_call.1} parent=43 // pred_check
          %p268 = pneg %p41
        $region46: #{tpu_custom_call.1} parent=43 // pred_check_branch
          %270 = sbr.rel (%p268) target = $region48
        $region47: #{tpu_custom_call.1} parent=43 // pred_region
          %s271 = sand.u32 %s31, 1
          %s272 = scalar_lea.sflag [#allocation3], %s271
          %s273 = sand.u32 %s31, 1
          %s274 = smul.addr %s273, 32
          %s275 = scalar_lea.vmem [#allocation2], %s274
          %s277 = ssub.s32 512, 512
          %278 = vsyncadd %s272, %s277
          %s279 = smul.addr %s21, 4
          %s280 = smul.addr %s279, 128
          %s281 = scalar_lea.hbm %s0, %s280
          %s283 = sshll.u32 %s275, 4
          %s284 = int_to_ptr.vmem [resolvable:$true] %s283
          %286 = dma.hbm_to_vmem [thread:$0]  %s281, 512, %s284, %s272
        $region48: #{tpu_custom_call.1} parent=43 // pred_fallthru
          _
      $region44: #{tpu_custom_call.1} parent=5 // pred_fallthru
        _
      %p287 = scmp.le.s32.totalorder 1, %s21
      %p288 = scmp.lt.s32.totalorder %s21, 3
      %p289 = pnand %p287, %p288
      %p290 = pneg %p289
      // Predicated region
      $region49: #{tpu_custom_call.1} parent=5 // pred_check
        _
      $region50: #{tpu_custom_call.1} parent=5 // pred_check_branch
        %292 = sbr.rel (%p289) target = $region52
      $region51: #{tpu_custom_call.1} parent=5 // pred_region
        %s293 = ssub.s32 %s21, 1
        %s294 = sand.u32 %s34, 1
        %s295 = scalar_lea.sflag [#allocation3], %s294
        %s296 = sand.u32 %s34, 1
        %s297 = smul.addr %s296, 32
        %s298 = scalar_lea.vmem [#allocation2], %s297
        // Predicated region
        $region53: #{tpu_custom_call.1} parent=51 // pred_check
          %p299 = pneg %p47
        $region54: #{tpu_custom_call.1} parent=51 // pred_check_branch
          %301 = sbr.rel (%p299) target = $region56
        $region55: #{tpu_custom_call.1} parent=51 // pred_region
          %302 = dma.done %s295, 512
        $region56: #{tpu_custom_call.1} parent=51 // pred_fallthru
          _
        // Predicated region
        $region57: #{tpu_custom_call.1} parent=51 // pred_check
          %p303 = pneg %p131
        $region58: #{tpu_custom_call.1} parent=51 // pred_check_branch
          %305 = sbr.rel (%p303) target = $region60
        $region59: #{tpu_custom_call.1} parent=51 // pred_region
          %306 = dma.done [#allocation6], 256
        $region60: #{tpu_custom_call.1} parent=51 // pred_fallthru
          _
        %s307 = sand.u32 %s34, 1
        %s308 = scalar_lea.sflag [#allocation3], %s307
        %s309 = sand.u32 %s34, 1
        %s310 = smul.addr %s309, 32
        %s311 = scalar_lea.vmem [#allocation2], %s310
        %p312 = pneg %p47
        %p313 = pneg %p44
        %p314 = pneg %p68
        %p315 = pneg %p65
        %p316 = pneg %p89
        %p317 = pneg %p86
        %p318 = pneg %p110
        %p319 = pneg %p107
        %p320 = pneg %p131
        %p321 = pneg %p128
        %p322 = pneg %p152
        %p323 = pneg %p149
        %p324 = pneg %p173
        %p325 = pneg %p170
        %p326 = pneg %p194
        %p327 = pneg %p191
        %p328 = pneg %p220
        %p329 = pneg %p217
        %s330 = sand.u32 %s207, 1
        %s331 = scalar_lea.sflag [#allocation4], %s330
        %s332 = sand.u32 %s207, 1
        %s333 = smul.addr %s332, 64
        %s334 = scalar_lea.vmem [#allocation7], %s333
        %v335 = vld [vmem:[%s1] sm:$0xff]
        %v336 = vld [vmem:[%s1 + $0x8] sm:$0xff]
        %v337 = vld [vmem:[%s1 + $0x10] sm:$0xff]
        %v338 = vld [vmem:[%s1 + $0x18] sm:$0xff]
        %v339 = vld [vmem:[%s298] sm:$0xff]
        %v340 = vld [vmem:[%s298 + $0x8] sm:$0xff]
        %v341 = vld [vmem:[%s298 + $0x10] sm:$0xff]
        %v342 = vld [vmem:[%s298 + $0x18] sm:$0xff]
        %343 = vrot.lane.b32.xlu0 %v339, 17
        %v344 = vpop.permute.xlu0 %343
        %345 = vrot.lane.b32.xlu0 %v340, 17
        %v346 = vpop.permute.xlu0 %345
        %347 = vrot.lane.b32.xlu0 %v341, 17
        %v348 = vpop.permute.xlu0 %347
        %349 = vrot.lane.b32.xlu0 %v342, 17
        %v350 = vpop.permute.xlu0 %349
        %v351 = vlaneseq
        %v352 = vand.u32 %v351, 127
        %vm353 = vcmp.lt.s32.totalorder %v352, 17
        %v354 = vsel %vm353, %v348, %v350
        %v355 = vsel %vm353, %v346, %v348
        %v356 = vsel %vm353, %v344, %v346
        %v357 = vsel %vm353, %v350, %v344
        %v358 = vlaneseq
        %v359 = vshrl.u32 %v358, 7
        %v360 = vsub.s32 0, %v359
        %v361 = vrot.slane %v335, %v360
        %v362 = vlaneseq
        %v363 = vshrl.u32 %v362, 7
        %v364 = vsub.s32 0, %v363
        %v365 = vrot.slane %v336, %v364
        %v366 = vlaneseq
        %v367 = vshrl.u32 %v366, 7
        %v368 = vsub.s32 0, %v367
        %v369 = vrot.slane %v337, %v368
        %v370 = vlaneseq
        %v371 = vshrl.u32 %v370, 7
        %v372 = vsub.s32 0, %v371
        %v373 = vrot.slane %v338, %v372
        %v374 = vmul.f32 %v357, %v361
        %v375 = vmul.f32 %v356, %v365
        %v376 = vmul.f32 %v355, %v369
        %v377 = vmul.f32 %v354, %v373
        %378 = vrot.lane.b32.xlu0 %v339, 16
        %v379 = vpop.permute.xlu0 %378
        %380 = vrot.lane.b32.xlu0 %v340, 16
        %v381 = vpop.permute.xlu0 %380
        %382 = vrot.lane.b32.xlu0 %v341, 16
        %v383 = vpop.permute.xlu0 %382
        %384 = vrot.lane.b32.xlu0 %v342, 16
        %v385 = vpop.permute.xlu0 %384
        %vm386 = vcmp.lt.s32.totalorder %v352, 16
        %v387 = vsel %vm386, %v383, %v385
        %v388 = vsel %vm386, %v381, %v383
        %v389 = vsel %vm386, %v379, %v381
        %v390 = vsel %vm386, %v385, %v379
        %v391 = vlaneseq
        %v392 = vshrl.u32 %v391, 7
        %v393 = vsub.s32 1, %v392
        %v394 = vrot.slane %v335, %v393
        %v395 = vlaneseq
        %v396 = vshrl.u32 %v395, 7
        %v397 = vsub.s32 1, %v396
        %v398 = vrot.slane %v336, %v397
        %v399 = vlaneseq
        %v400 = vshrl.u32 %v399, 7
        %v401 = vsub.s32 1, %v400
        %v402 = vrot.slane %v337, %v401
        %v403 = vlaneseq
        %v404 = vshrl.u32 %v403, 7
        %v405 = vsub.s32 1, %v404
        %v406 = vrot.slane %v338, %v405
        %v407 = vmul.f32 %v390, %v394
        %v408 = vmul.f32 %v389, %v398
        %v409 = vmul.f32 %v388, %v402
        %v410 = vmul.f32 %v387, %v406
        %411 = vrot.lane.b32.xlu0 %v339, 15
        %v412 = vpop.permute.xlu0 %411
        %413 = vrot.lane.b32.xlu0 %v340, 15
        %v414 = vpop.permute.xlu0 %413
        %415 = vrot.lane.b32.xlu0 %v341, 15
        %v416 = vpop.permute.xlu0 %415
        %417 = vrot.lane.b32.xlu0 %v342, 15
        %v418 = vpop.permute.xlu0 %417
        %vm419 = vcmp.lt.s32.totalorder %v352, 15
        %v420 = vsel %vm419, %v416, %v418
        %v421 = vsel %vm419, %v414, %v416
        %v422 = vsel %vm419, %v412, %v414
        %v423 = vsel %vm419, %v418, %v412
        %v424 = vlaneseq
        %v425 = vshrl.u32 %v424, 7
        %v426 = vsub.s32 2, %v425
        %v427 = vrot.slane %v335, %v426
        %v428 = vlaneseq
        %v429 = vshrl.u32 %v428, 7
        %v430 = vsub.s32 2, %v429
        %v431 = vrot.slane %v336, %v430
        %v432 = vlaneseq
        %v433 = vshrl.u32 %v432, 7
        %v434 = vsub.s32 2, %v433
        %v435 = vrot.slane %v337, %v434
        %v436 = vlaneseq
        %v437 = vshrl.u32 %v436, 7
        %v438 = vsub.s32 2, %v437
        %v439 = vrot.slane %v338, %v438
        %v440 = vmul.f32 %v423, %v427
        %v441 = vmul.f32 %v422, %v431
        %v442 = vmul.f32 %v421, %v435
        %v443 = vmul.f32 %v420, %v439
        %444 = vrot.lane.b32.xlu0 %v339, 1
        %v445 = vpop.permute.xlu0 %444
        %446 = vrot.lane.b32.xlu0 %v340, 1
        %v447 = vpop.permute.xlu0 %446
        %448 = vrot.lane.b32.xlu0 %v341, 1
        %v449 = vpop.permute.xlu0 %448
        %450 = vrot.lane.b32.xlu0 %v342, 1
        %v451 = vpop.permute.xlu0 %450
        %vm452 = vcmp.lt.s32.totalorder %v352, 1
        %v453 = vsel %vm452, %v449, %v451
        %v454 = vsel %vm452, %v447, %v449
        %v455 = vsel %vm452, %v445, %v447
        %v456 = vsel %vm452, %v451, %v445
        %v457 = vlaneseq
        %v458 = vshrl.u32 %v457, 7
        %v459 = vsub.s32 3, %v458
        %v460 = vrot.slane %v335, %v459
        %v461 = vlaneseq
        %v462 = vshrl.u32 %v461, 7
        %v463 = vsub.s32 3, %v462
        %v464 = vrot.slane %v336, %v463
        %v465 = vlaneseq
        %v466 = vshrl.u32 %v465, 7
        %v467 = vsub.s32 3, %v466
        %v468 = vrot.slane %v337, %v467
        %v469 = vlaneseq
        %v470 = vshrl.u32 %v469, 7
        %v471 = vsub.s32 3, %v470
        %v472 = vrot.slane %v338, %v471
        %v473 = vmul.f32 %v456, %v460
        %v474 = vmul.f32 %v455, %v464
        %v475 = vmul.f32 %v454, %v468
        %v476 = vmul.f32 %v453, %v472
        %477 = vrot.lane.b32.xlu0 %v339, 127
        %v478 = vpop.permute.xlu0 %477
        %479 = vrot.lane.b32.xlu0 %v340, 127
        %v480 = vpop.permute.xlu0 %479
        %481 = vrot.lane.b32.xlu0 %v341, 127
        %v482 = vpop.permute.xlu0 %481
        %483 = vrot.lane.b32.xlu0 %v342, 127
        %v484 = vpop.permute.xlu0 %483
        %vm485 = vcmp.lt.s32.totalorder %v352, 127
        %v486 = vsel %vm485, %v482, %v484
        %v487 = vsel %vm485, %v480, %v482
        %v488 = vsel %vm485, %v478, %v480
        %v489 = vsel %vm485, %v484, %v478
        %v490 = vlaneseq
        %v491 = vshrl.u32 %v490, 7
        %v492 = vsub.s32 4, %v491
        %v493 = vrot.slane %v335, %v492
        %v494 = vlaneseq
        %v495 = vshrl.u32 %v494, 7
        %v496 = vsub.s32 4, %v495
        %v497 = vrot.slane %v336, %v496
        %v498 = vlaneseq
        %v499 = vshrl.u32 %v498, 7
        %v500 = vsub.s32 4, %v499
        %v501 = vrot.slane %v337, %v500
        %v502 = vlaneseq
        %v503 = vshrl.u32 %v502, 7
        %v504 = vsub.s32 4, %v503
        %v505 = vrot.slane %v338, %v504
        %v506 = vmul.f32 %v488, %v493
        %v507 = vmul.f32 %v487, %v497
        %v508 = vmul.f32 %v486, %v501
        %v509 = vmul.f32 %v489, %v505
        %510 = vrot.lane.b32.xlu0 %v339, 113
        %v511 = vpop.permute.xlu0 %510
        %512 = vrot.lane.b32.xlu0 %v340, 113
        %v513 = vpop.permute.xlu0 %512
        %514 = vrot.lane.b32.xlu0 %v341, 113
        %v515 = vpop.permute.xlu0 %514
        %516 = vrot.lane.b32.xlu0 %v342, 113
        %v517 = vpop.permute.xlu0 %516
        %vm518 = vcmp.lt.s32.totalorder %v352, 113
        %v519 = vsel %vm518, %v515, %v517
        %v520 = vsel %vm518, %v513, %v515
        %v521 = vsel %vm518, %v511, %v513
        %v522 = vsel %vm518, %v517, %v511
        %v523 = vlaneseq
        %v524 = vshrl.u32 %v523, 7
        %v525 = vsub.s32 5, %v524
        %v526 = vrot.slane %v335, %v525
        %v527 = vlaneseq
        %v528 = vshrl.u32 %v527, 7
        %v529 = vsub.s32 5, %v528
        %v530 = vrot.slane %v336, %v529
        %v531 = vlaneseq
        %v532 = vshrl.u32 %v531, 7
        %v533 = vsub.s32 5, %v532
        %v534 = vrot.slane %v337, %v533
        %v535 = vlaneseq
        %v536 = vshrl.u32 %v535, 7
        %v537 = vsub.s32 5, %v536
        %v538 = vrot.slane %v338, %v537
        %v539 = vmul.f32 %v521, %v526
        %v540 = vmul.f32 %v520, %v530
        %v541 = vmul.f32 %v519, %v534
        %v542 = vmul.f32 %v522, %v538
        %543 = vrot.lane.b32.xlu0 %v339, 112
        %v544 = vpop.permute.xlu0 %543
        %545 = vrot.lane.b32.xlu0 %v340, 112
        %v546 = vpop.permute.xlu0 %545
        %547 = vrot.lane.b32.xlu0 %v341, 112
        %v548 = vpop.permute.xlu0 %547
        %549 = vrot.lane.b32.xlu0 %v342, 112
        %v550 = vpop.permute.xlu0 %549
        %vm551 = vcmp.lt.s32.totalorder %v352, 112
        %v552 = vsel %vm551, %v548, %v550
        %v553 = vsel %vm551, %v546, %v548
        %v554 = vsel %vm551, %v544, %v546
        %v555 = vsel %vm551, %v550, %v544
        %v556 = vlaneseq
        %v557 = vshrl.u32 %v556, 7
        %v558 = vsub.s32 6, %v557
        %v559 = vrot.slane %v335, %v558
        %v560 = vlaneseq
        %v561 = vshrl.u32 %v560, 7
        %v562 = vsub.s32 6, %v561
        %v563 = vrot.slane %v336, %v562
        %v564 = vlaneseq
        %v565 = vshrl.u32 %v564, 7
        %v566 = vsub.s32 6, %v565
        %v567 = vrot.slane %v337, %v566
        %v568 = vlaneseq
        %v569 = vshrl.u32 %v568, 7
        %v570 = vsub.s32 6, %v569
        %v571 = vrot.slane %v338, %v570
        %v572 = vmul.f32 %v554, %v559
        %v573 = vmul.f32 %v553, %v563
        %v574 = vmul.f32 %v552, %v567
        %v575 = vmul.f32 %v555, %v571
        %576 = vrot.lane.b32.xlu0 %v339, 111
        %v577 = vpop.permute.xlu0 %576
        %578 = vrot.lane.b32.xlu0 %v340, 111
        %v579 = vpop.permute.xlu0 %578
        %580 = vrot.lane.b32.xlu0 %v341, 111
        %v581 = vpop.permute.xlu0 %580
        %582 = vrot.lane.b32.xlu0 %v342, 111
        %v583 = vpop.permute.xlu0 %582
        %vm584 = vcmp.lt.s32.totalorder %v352, 111
        %v585 = vsel %vm584, %v581, %v583
        %v586 = vsel %vm584, %v579, %v581
        %v587 = vsel %vm584, %v577, %v579
        %v588 = vsel %vm584, %v583, %v577
        %v589 = vlaneseq
        %v590 = vshrl.u32 %v589, 7
        %v591 = vsub.s32 7, %v590
        %v592 = vrot.slane %v335, %v591
        %v593 = vlaneseq
        %v594 = vshrl.u32 %v593, 7
        %v595 = vsub.s32 7, %v594
        %v596 = vrot.slane %v336, %v595
        %v597 = vlaneseq
        %v598 = vshrl.u32 %v597, 7
        %v599 = vsub.s32 7, %v598
        %v600 = vrot.slane %v337, %v599
        %v601 = vlaneseq
        %v602 = vshrl.u32 %v601, 7
        %v603 = vsub.s32 7, %v602
        %v604 = vrot.slane %v338, %v603
        %v605 = vmul.f32 %v587, %v592
        %v606 = vmul.f32 %v586, %v596
        %v607 = vmul.f32 %v585, %v600
        %v608 = vmul.f32 %v588, %v604
        %v609 = vld [vmem:[%s2] sm:$0xff]
        %v610 = vld [vmem:[%s2 + $0x8] sm:$0xff]
        %v611 = vld [vmem:[%s3] sm:$0xff]
        %v612 = vld [vmem:[%s3 + $0x8] sm:$0xff]
        %614 = vset.pattern.permute.xlu0 0
        %615 = vperm.xlu0 %614, %v611
        %v616 = vpop.permute.xlu0 %615
        %619 = vset.pattern.permute.xlu0 0
        %620 = vperm.xlu0 %619, %v612
        %v621 = vpop.permute.xlu0 %620
        %vm623 = vcmask 588800
        %v625 = vsel %vm623, %v609, 0
        %v628 = vsel %vm623, %v610, 0
        %630 = vmatprep.subr.mxu0 %v375
        %631 = vmatpush1.msra.mxu0 %v374
        %632 = vmatprep.subr.mxu0 %v408
        %633 = vmatpush1.msra.mxu0 %v407
        %634 = vmatprep.subr.mxu0 %v441
        %635 = vmatpush1.msra.mxu0 %v440
        %636 = vmatprep.subr.mxu0 %v474
        %637 = vmatpush1.msra.mxu0 %v473
        %638 = vmatprep.subr.mxu0 %v340
        %639 = vmatpush1.msra.mxu0 %v339
        %640 = vmatprep.subr.mxu0 %v507
        %641 = vmatpush1.msra.mxu0 %v506
        %642 = vmatprep.subr.mxu0 %v540
        %643 = vmatpush1.msra.mxu0 %v539
        %644 = vmatprep.subr.mxu0 %v573
        %645 = vmatpush1.msra.mxu0 %v572
        %646 = vmatprep.subr.mxu0 %v606
        %647 = vmatpush1.msra.mxu0 %v605
        %648 = vmatprep.subr.mxu0 0.0
        %649 = vmatpush1.msra.mxu0 0.0
        %650 = vmatprep.subr.mxu0 0.0
        %651 = vmatpush1.msra.mxu0 0.0
        %652 = vmatprep.subr.mxu0 0.0
        %653 = vmatpush1.msra.mxu0 0.0
        %654 = vmatprep.subr.mxu0 0.0
        %655 = vmatpush1.msra.mxu0 0.0
        %656 = vmatprep.subr.mxu0 0.0
        %657 = vmatpush1.msra.mxu0 0.0
        %658 = vmatprep.subr.mxu0 0.0
        %659 = vmatpush1.msra.mxu0 0.0
        %660 = vmatprep.subr.mxu0 0.0
        %661 = vmatpush1.msra.mxu0 0.0
        %662 = vmatprep.subr.mxu0 0.0
        %663 = vmatpush1.msra.mxu0 0.0
        %664 = vmatprep.subr.mxu0 0.0
        %665 = vmatpush1.msra.mxu0 0.0
        %666 = vmatprep.subr.mxu0 0.0
        %667 = vmatpush1.msra.mxu0 0.0
        %668 = vmatprep.subr.mxu0 0.0
        %669 = vmatpush1.msra.mxu0 0.0
        %670 = vmatprep.subr.mxu0 0.0
        %671 = vmatpush1.msra.mxu0 0.0
        %672 = vmatprep.subr.mxu0 0.0
        %673 = vmatpush1.msra.mxu0 0.0
        %674 = vmatprep.subr.mxu0 0.0
        %675 = vmatpush1.msra.mxu0 0.0
        %676 = vmatprep.subr.mxu0 0.0
        %677 = vmatpush1.msra.mxu0 0.0
        %678 = vmatprep.subr.mxu0 0.0
        %679 = vmatpush1.msra.mxu0 0.0
        %680 = vmatprep.subr.mxu0 0.0
        %681 = vmatpush1.msra.mxu0 0.0
        %682 = vmatprep.subr.mxu0 0.0
        %683 = vmatpush1.msra.mxu0 0.0
        %684 = vmatprep.subr.mxu0 0.0
        %685 = vmatpush1.msra.mxu0 0.0
        %686 = vmatprep.subr.mxu0 0.0
        %687 = vmatpush1.msra.mxu0 0.0
        %688 = vmatprep.subr.mxu0 0.0
        %689 = vmatpush1.msra.mxu0 0.0
        %690 = vmatprep.subr.mxu0 0.0
        %691 = vmatpush1.msra.mxu0 0.0
        %692 = vmatprep.subr.mxu0 0.0
        %693 = vmatpush1.msra.mxu0 0.0
        %694 = vmatprep.mubr.f32.mxu0 0.0
        %695 = vmatmul.mubr.f32.gmra.mrb[0].mxu0 %v625
        %v696 = vpop.f32.mrb[0].mxu0
        %v697 = vadd.f32 %v616, %v696
        %v698 = vpop.f32.mrb[0].mxu0
        %v699 = vadd.f32 %v616, %v698
        %700 = vmatprep.mubr.f32.mxu0 0.0
        %701 = vmatmul.mubr.f32.gmra.mrb[0].mxu0 %v628
        %v702 = vpop.f32.mrb[0].mxu0
        %v703 = vadd.f32 %v621, %v702
        %v704 = vpop.f32.mrb[0].mxu0
        %v705 = vadd.f32 %v621, %v704
        %706 = vdwg.mxu0
        %707 = vmatprep.subr.mxu0 %v377
        %708 = vmatpush1.msra.mxu0 %v376
        %709 = vmatprep.subr.mxu0 %v410
        %710 = vmatpush1.msra.mxu0 %v409
        %711 = vmatprep.subr.mxu0 %v443
        %712 = vmatpush1.msra.mxu0 %v442
        %713 = vmatprep.subr.mxu0 %v476
        %714 = vmatpush1.msra.mxu0 %v475
        %715 = vmatprep.subr.mxu0 %v342
        %716 = vmatpush1.msra.mxu0 %v341
        %717 = vmatprep.subr.mxu0 %v509
        %718 = vmatpush1.msra.mxu0 %v508
        %719 = vmatprep.subr.mxu0 %v542
        %720 = vmatpush1.msra.mxu0 %v541
        %721 = vmatprep.subr.mxu0 %v575
        %722 = vmatpush1.msra.mxu0 %v574
        %723 = vmatprep.subr.mxu0 %v608
        %724 = vmatpush1.msra.mxu0 %v607
        %725 = vmatprep.subr.mxu0 0.0
        %726 = vmatpush1.msra.mxu0 0.0
        %727 = vmatprep.subr.mxu0 0.0
        %728 = vmatpush1.msra.mxu0 0.0
        %729 = vmatprep.subr.mxu0 0.0
        %730 = vmatpush1.msra.mxu0 0.0
        %731 = vmatprep.subr.mxu0 0.0
        %732 = vmatpush1.msra.mxu0 0.0
        %733 = vmatprep.subr.mxu0 0.0
        %734 = vmatpush1.msra.mxu0 0.0
        %735 = vmatprep.subr.mxu0 0.0
        %736 = vmatpush1.msra.mxu0 0.0
        %737 = vmatprep.subr.mxu0 0.0
        %738 = vmatpush1.msra.mxu0 0.0
        %739 = vmatprep.subr.mxu0 0.0
        %740 = vmatpush1.msra.mxu0 0.0
        %741 = vmatprep.subr.mxu0 0.0
        %742 = vmatpush1.msra.mxu0 0.0
        %743 = vmatprep.subr.mxu0 0.0
        %744 = vmatpush1.msra.mxu0 0.0
        %745 = vmatprep.subr.mxu0 0.0
        %746 = vmatpush1.msra.mxu0 0.0
        %747 = vmatprep.subr.mxu0 0.0
        %748 = vmatpush1.msra.mxu0 0.0
        %749 = vmatprep.subr.mxu0 0.0
        %750 = vmatpush1.msra.mxu0 0.0
        %751 = vmatprep.subr.mxu0 0.0
        %752 = vmatpush1.msra.mxu0 0.0
        %753 = vmatprep.subr.mxu0 0.0
        %754 = vmatpush1.msra.mxu0 0.0
        %755 = vmatprep.subr.mxu0 0.0
        %756 = vmatpush1.msra.mxu0 0.0
        %757 = vmatprep.subr.mxu0 0.0
        %758 = vmatpush1.msra.mxu0 0.0
        %759 = vmatprep.subr.mxu0 0.0
        %760 = vmatpush1.msra.mxu0 0.0
        %761 = vmatprep.subr.mxu0 0.0
        %762 = vmatpush1.msra.mxu0 0.0
        %763 = vmatprep.subr.mxu0 0.0
        %764 = vmatpush1.msra.mxu0 0.0
        %765 = vmatprep.subr.mxu0 0.0
        %766 = vmatpush1.msra.mxu0 0.0
        %767 = vmatprep.subr.mxu0 0.0
        %768 = vmatpush1.msra.mxu0 0.0
        %769 = vmatprep.subr.mxu0 0.0
        %770 = vmatpush1.msra.mxu0 0.0
        %771 = vmatprep.mubr.f32.mxu0 0.0
        %772 = vmatmul.mubr.f32.gmra.mrb[0].mxu0 %v625
        %v773 = vpop.f32.mrb[0].mxu0
        %v774 = vadd.f32 %v616, %v773
        %v775 = vpop.f32.mrb[0].mxu0
        %v776 = vadd.f32 %v616, %v775
        %777 = vmatprep.mubr.f32.mxu0 0.0
        %778 = vmatmul.mubr.f32.gmra.mrb[0].mxu0 %v628
        %v779 = vpop.f32.mrb[0].mxu0
        %v780 = vadd.f32 %v621, %v779
        %v781 = vpop.f32.mrb[0].mxu0
        %v782 = vadd.f32 %v621, %v781
        %783 = vdwg.mxu0
        %v784 = vtanh.pop %v697
        %v785 = vtanh.pop %v699
        %v786 = vtanh.pop %v774
        %v787 = vtanh.pop %v776
        %v788 = vtanh.pop %v703
        %v789 = vtanh.pop %v705
        %v790 = vtanh.pop %v780
        %v791 = vtanh.pop %v782
        %792 = vrot.lane.b32.xlu0 %v784, 17
        %v793 = vpop.permute.xlu0 %792
        %794 = vrot.lane.b32.xlu0 %v788, 17
        %v795 = vpop.permute.xlu0 %794
        %796 = vrot.lane.b32.xlu0 %v785, 17
        %v797 = vpop.permute.xlu0 %796
        %798 = vrot.lane.b32.xlu0 %v789, 17
        %v799 = vpop.permute.xlu0 %798
        %800 = vrot.lane.b32.xlu0 %v786, 17
        %v801 = vpop.permute.xlu0 %800
        %802 = vrot.lane.b32.xlu0 %v790, 17
        %v803 = vpop.permute.xlu0 %802
        %804 = vrot.lane.b32.xlu0 %v787, 17
        %v805 = vpop.permute.xlu0 %804
        %806 = vrot.lane.b32.xlu0 %v791, 17
        %v807 = vpop.permute.xlu0 %806
        %v808 = vsel %vm353, %v801, %v805
        %v809 = vsel %vm353, %v803, %v807
        %v810 = vsel %vm353, %v797, %v801
        %v811 = vsel %vm353, %v799, %v803
        %v812 = vsel %vm353, %v793, %v797
        %v813 = vsel %vm353, %v795, %v799
        %v814 = vsel %vm353, %v805, %v793
        %v815 = vsel %vm353, %v807, %v795
        %v816 = vmul.f32 %v814, %v361
        %v817 = vmul.f32 %v812, %v365
        %v818 = vmul.f32 %v810, %v369
        %v819 = vmul.f32 %v808, %v373
        %v820 = vmul.f32 %v815, %v361
        %v821 = vmul.f32 %v813, %v365
        %v822 = vmul.f32 %v811, %v369
        %v823 = vmul.f32 %v809, %v373
        %824 = vrot.lane.b32.xlu0 %v784, 16
        %v825 = vpop.permute.xlu0 %824
        %826 = vrot.lane.b32.xlu0 %v788, 16
        %v827 = vpop.permute.xlu0 %826
        %828 = vrot.lane.b32.xlu0 %v785, 16
        %v829 = vpop.permute.xlu0 %828
        %830 = vrot.lane.b32.xlu0 %v789, 16
        %v831 = vpop.permute.xlu0 %830
        %832 = vrot.lane.b32.xlu0 %v786, 16
        %v833 = vpop.permute.xlu0 %832
        %834 = vrot.lane.b32.xlu0 %v790, 16
        %v835 = vpop.permute.xlu0 %834
        %836 = vrot.lane.b32.xlu0 %v787, 16
        %v837 = vpop.permute.xlu0 %836
        %838 = vrot.lane.b32.xlu0 %v791, 16
        %v839 = vpop.permute.xlu0 %838
        %v840 = vsel %vm386, %v833, %v837
        %v841 = vsel %vm386, %v835, %v839
        %v842 = vsel %vm386, %v829, %v833
        %v843 = vsel %vm386, %v831, %v835
        %v844 = vsel %vm386, %v825, %v829
        %v845 = vsel %vm386, %v827, %v831
        %v846 = vsel %vm386, %v837, %v825
        %v847 = vsel %vm386, %v839, %v827
        %v848 = vmul.f32 %v846, %v394
        %v849 = vmul.f32 %v844, %v398
        %v850 = vmul.f32 %v842, %v402
        %v851 = vmul.f32 %v840, %v406
        %v852 = vmul.f32 %v847, %v394
        %v853 = vmul.f32 %v845, %v398
        %v854 = vmul.f32 %v843, %v402
        %v855 = vmul.f32 %v841, %v406
        %856 = vrot.lane.b32.xlu0 %v784, 15
        %v857 = vpop.permute.xlu0 %856
        %858 = vrot.lane.b32.xlu0 %v788, 15
        %v859 = vpop.permute.xlu0 %858
        %860 = vrot.lane.b32.xlu0 %v785, 15
        %v861 = vpop.permute.xlu0 %860
        %862 = vrot.lane.b32.xlu0 %v789, 15
        %v863 = vpop.permute.xlu0 %862
        %864 = vrot.lane.b32.xlu0 %v786, 15
        %v865 = vpop.permute.xlu0 %864
        %866 = vrot.lane.b32.xlu0 %v790, 15
        %v867 = vpop.permute.xlu0 %866
        %868 = vrot.lane.b32.xlu0 %v787, 15
        %v869 = vpop.permute.xlu0 %868
        %870 = vrot.lane.b32.xlu0 %v791, 15
        %v871 = vpop.permute.xlu0 %870
        %v872 = vsel %vm419, %v865, %v869
        %v873 = vsel %vm419, %v867, %v871
        %v874 = vsel %vm419, %v861, %v865
        %v875 = vsel %vm419, %v863, %v867
        %v876 = vsel %vm419, %v857, %v861
        %v877 = vsel %vm419, %v859, %v863
        %v878 = vsel %vm419, %v869, %v857
        %v879 = vsel %vm419, %v871, %v859
        %v880 = vmul.f32 %v878, %v427
        %v881 = vmul.f32 %v876, %v431
        %v882 = vmul.f32 %v874, %v435
        %v883 = vmul.f32 %v872, %v439
        %v884 = vmul.f32 %v879, %v427
        %v885 = vmul.f32 %v877, %v431
        %v886 = vmul.f32 %v875, %v435
        %v887 = vmul.f32 %v873, %v439
        %888 = vrot.lane.b32.xlu0 %v784, 1
        %v889 = vpop.permute.xlu0 %888
        %890 = vrot.lane.b32.xlu0 %v788, 1
        %v891 = vpop.permute.xlu0 %890
        %892 = vrot.lane.b32.xlu0 %v785, 1
        %v893 = vpop.permute.xlu0 %892
        %894 = vrot.lane.b32.xlu0 %v789, 1
        %v895 = vpop.permute.xlu0 %894
        %896 = vrot.lane.b32.xlu0 %v786, 1
        %v897 = vpop.permute.xlu0 %896
        %898 = vrot.lane.b32.xlu0 %v790, 1
        %v899 = vpop.permute.xlu0 %898
        %900 = vrot.lane.b32.xlu0 %v787, 1
        %v901 = vpop.permute.xlu0 %900
        %902 = vrot.lane.b32.xlu0 %v791, 1
        %v903 = vpop.permute.xlu0 %902
        %v904 = vsel %vm452, %v897, %v901
        %v905 = vsel %vm452, %v899, %v903
        %v906 = vsel %vm452, %v893, %v897
        %v907 = vsel %vm452, %v895, %v899
        %v908 = vsel %vm452, %v889, %v893
        %v909 = vsel %vm452, %v891, %v895
        %v910 = vsel %vm452, %v901, %v889
        %v911 = vsel %vm452, %v903, %v891
        %v912 = vmul.f32 %v910, %v460
        %v913 = vmul.f32 %v908, %v464
        %v914 = vmul.f32 %v906, %v468
        %v915 = vmul.f32 %v904, %v472
        %v916 = vmul.f32 %v911, %v460
        %v917 = vmul.f32 %v909, %v464
        %v918 = vmul.f32 %v907, %v468
        %v919 = vmul.f32 %v905, %v472
        %920 = vrot.lane.b32.xlu0 %v784, 127
        %v921 = vpop.permute.xlu0 %920
        %922 = vrot.lane.b32.xlu0 %v788, 127
        %v923 = vpop.permute.xlu0 %922
        %924 = vrot.lane.b32.xlu0 %v785, 127
        %v925 = vpop.permute.xlu0 %924
        %926 = vrot.lane.b32.xlu0 %v789, 127
        %v927 = vpop.permute.xlu0 %926
        %928 = vrot.lane.b32.xlu0 %v786, 127
        %v929 = vpop.permute.xlu0 %928
        %930 = vrot.lane.b32.xlu0 %v790, 127
        %v931 = vpop.permute.xlu0 %930
        %932 = vrot.lane.b32.xlu0 %v787, 127
        %v933 = vpop.permute.xlu0 %932
        %934 = vrot.lane.b32.xlu0 %v791, 127
        %v935 = vpop.permute.xlu0 %934
        %v936 = vsel %vm485, %v929, %v933
        %v937 = vsel %vm485, %v931, %v935
        %v938 = vsel %vm485, %v925, %v929
        %v939 = vsel %vm485, %v927, %v931
        %v940 = vsel %vm485, %v921, %v925
        %v941 = vsel %vm485, %v923, %v927
        %v942 = vsel %vm485, %v933, %v921
        %v943 = vsel %vm485, %v935, %v923
        %v944 = vmul.f32 %v940, %v493
        %v945 = vmul.f32 %v938, %v497
        %v946 = vmul.f32 %v936, %v501
        %v947 = vmul.f32 %v942, %v505
        %v948 = vmul.f32 %v941, %v493
        %v949 = vmul.f32 %v939, %v497
        %v950 = vmul.f32 %v937, %v501
        %v951 = vmul.f32 %v943, %v505
        %952 = vrot.lane.b32.xlu0 %v784, 113
        %v953 = vpop.permute.xlu0 %952
        %954 = vrot.lane.b32.xlu0 %v788, 113
        %v955 = vpop.permute.xlu0 %954
        %956 = vrot.lane.b32.xlu0 %v785, 113
        %v957 = vpop.permute.xlu0 %956
        %958 = vrot.lane.b32.xlu0 %v789, 113
        %v959 = vpop.permute.xlu0 %958
        %960 = vrot.lane.b32.xlu0 %v786, 113
        %v961 = vpop.permute.xlu0 %960
        %962 = vrot.lane.b32.xlu0 %v790, 113
        %v963 = vpop.permute.xlu0 %962
        %964 = vrot.lane.b32.xlu0 %v787, 113
        %v965 = vpop.permute.xlu0 %964
        %966 = vrot.lane.b32.xlu0 %v791, 113
        %v967 = vpop.permute.xlu0 %966
        %v968 = vsel %vm518, %v961, %v965
        %v969 = vsel %vm518, %v963, %v967
        %v970 = vsel %vm518, %v957, %v961
        %v971 = vsel %vm518, %v959, %v963
        %v972 = vsel %vm518, %v953, %v957
        %v973 = vsel %vm518, %v955, %v959
        %v974 = vsel %vm518, %v965, %v953
        %v975 = vsel %vm518, %v967, %v955
        %v976 = vmul.f32 %v972, %v526
        %v977 = vmul.f32 %v970, %v530
        %v978 = vmul.f32 %v968, %v534
        %v979 = vmul.f32 %v974, %v538
        %v980 = vmul.f32 %v973, %v526
        %v981 = vmul.f32 %v971, %v530
        %v982 = vmul.f32 %v969, %v534
        %v983 = vmul.f32 %v975, %v538
        %984 = vrot.lane.b32.xlu0 %v784, 112
        %v985 = vpop.permute.xlu0 %984
        %986 = vrot.lane.b32.xlu0 %v788, 112
        %v987 = vpop.permute.xlu0 %986
        %988 = vrot.lane.b32.xlu0 %v785, 112
        %v989 = vpop.permute.xlu0 %988
        %990 = vrot.lane.b32.xlu0 %v789, 112
        %v991 = vpop.permute.xlu0 %990
        %992 = vrot.lane.b32.xlu0 %v786, 112
        %v993 = vpop.permute.xlu0 %992
        %994 = vrot.lane.b32.xlu0 %v790, 112
        %v995 = vpop.permute.xlu0 %994
        %996 = vrot.lane.b32.xlu0 %v787, 112
        %v997 = vpop.permute.xlu0 %996
        %998 = vrot.lane.b32.xlu0 %v791, 112
        %v999 = vpop.permute.xlu0 %998
        %v1000 = vsel %vm551, %v993, %v997
        %v1001 = vsel %vm551, %v995, %v999
        %v1002 = vsel %vm551, %v989, %v993
        %v1003 = vsel %vm551, %v991, %v995
        %v1004 = vsel %vm551, %v985, %v989
        %v1005 = vsel %vm551, %v987, %v991
        %v1006 = vsel %vm551, %v997, %v985
        %v1007 = vsel %vm551, %v999, %v987
        %v1008 = vmul.f32 %v1004, %v559
        %v1009 = vmul.f32 %v1002, %v563
        %v1010 = vmul.f32 %v1000, %v567
        %v1011 = vmul.f32 %v1006, %v571
        %v1012 = vmul.f32 %v1005, %v559
        %v1013 = vmul.f32 %v1003, %v563
        %v1014 = vmul.f32 %v1001, %v567
        %v1015 = vmul.f32 %v1007, %v571
        %1016 = vrot.lane.b32.xlu0 %v784, 111
        %v1017 = vpop.permute.xlu0 %1016
        %1018 = vrot.lane.b32.xlu0 %v788, 111
        %v1019 = vpop.permute.xlu0 %1018
        %1020 = vrot.lane.b32.xlu0 %v785, 111
        %v1021 = vpop.permute.xlu0 %1020
        %1022 = vrot.lane.b32.xlu0 %v789, 111
        %v1023 = vpop.permute.xlu0 %1022
        %1024 = vrot.lane.b32.xlu0 %v786, 111
        %v1025 = vpop.permute.xlu0 %1024
        %1026 = vrot.lane.b32.xlu0 %v790, 111
        %v1027 = vpop.permute.xlu0 %1026
        %1028 = vrot.lane.b32.xlu0 %v787, 111
        %v1029 = vpop.permute.xlu0 %1028
        %1030 = vrot.lane.b32.xlu0 %v791, 111
        %v1031 = vpop.permute.xlu0 %1030
        %v1032 = vsel %vm584, %v1025, %v1029
        %v1033 = vsel %vm584, %v1027, %v1031
        %v1034 = vsel %vm584, %v1021, %v1025
        %v1035 = vsel %vm584, %v1023, %v1027
        %v1036 = vsel %vm584, %v1017, %v1021
        %v1037 = vsel %vm584, %v1019, %v1023
        %v1038 = vsel %vm584, %v1029, %v1017
        %v1039 = vsel %vm584, %v1031, %v1019
        %v1040 = vmul.f32 %v1036, %v592
        %v1041 = vmul.f32 %v1034, %v596
        %v1042 = vmul.f32 %v1032, %v600
        %v1043 = vmul.f32 %v1038, %v604
        %v1044 = vmul.f32 %v1037, %v592
        %v1045 = vmul.f32 %v1035, %v596
        %v1046 = vmul.f32 %v1033, %v600
        %v1047 = vmul.f32 %v1039, %v604
        %v1048 = vld [vmem:[#allocation5] sm:$0xff]
        %v1049 = vld [vmem:[#allocation5 + $0x8] sm:$0xff]
        %v1050 = vld [vmem:[%s5] sm:$0xff]
        %1052 = vset.pattern.permute.xlu0 0
        %1053 = vperm.xlu0 %1052, %v1050
        %v1054 = vpop.permute.xlu0 %1053
        %vm1056 = vcmask 130048
        %v1058 = vsel %vm1056, %v1049, 0
        %1060 = vmatprep.subr.mxu0 %v817
        %1061 = vmatpush1.msra.mxu0 %v816
        %1062 = vmatprep.subr.mxu0 %v821
        %1063 = vmatpush1.msra.mxu0 %v820
        %1064 = vmatprep.subr.mxu0 %v849
        %1065 = vmatpush1.msra.mxu0 %v848
        %1066 = vmatprep.subr.mxu0 %v853
        %1067 = vmatpush1.msra.mxu0 %v852
        %1068 = vmatprep.subr.mxu0 %v881
        %1069 = vmatpush1.msra.mxu0 %v880
        %1070 = vmatprep.subr.mxu0 %v885
        %1071 = vmatpush1.msra.mxu0 %v884
        %1072 = vmatprep.subr.mxu0 %v913
        %1073 = vmatpush1.msra.mxu0 %v912
        %1074 = vmatprep.subr.mxu0 %v917
        %1075 = vmatpush1.msra.mxu0 %v916
        %1076 = vmatprep.subr.mxu0 %v785
        %1077 = vmatpush1.msra.mxu0 %v784
        %1078 = vmatprep.subr.mxu0 %v789
        %1079 = vmatpush1.msra.mxu0 %v788
        %1080 = vmatprep.subr.mxu0 %v945
        %1081 = vmatpush1.msra.mxu0 %v944
        %1082 = vmatprep.subr.mxu0 %v949
        %1083 = vmatpush1.msra.mxu0 %v948
        %1084 = vmatprep.subr.mxu0 %v977
        %1085 = vmatpush1.msra.mxu0 %v976
        %1086 = vmatprep.subr.mxu0 %v981
        %1087 = vmatpush1.msra.mxu0 %v980
        %1088 = vmatprep.subr.mxu0 %v1009
        %1089 = vmatpush1.msra.mxu0 %v1008
        %1090 = vmatprep.subr.mxu0 %v1013
        %1091 = vmatpush1.msra.mxu0 %v1012
        %1092 = vmatprep.subr.mxu0 %v1041
        %1093 = vmatpush1.msra.mxu0 %v1040
        %1094 = vmatprep.subr.mxu0 %v1045
        %1095 = vmatpush1.msra.mxu0 %v1044
        %1096 = vmatprep.subr.mxu0 0.0
        %1097 = vmatpush1.msra.mxu0 0.0
        %1098 = vmatprep.subr.mxu0 0.0
        %1099 = vmatpush1.msra.mxu0 0.0
        %1100 = vmatprep.subr.mxu0 0.0
        %1101 = vmatpush1.msra.mxu0 0.0
        %1102 = vmatprep.subr.mxu0 0.0
        %1103 = vmatpush1.msra.mxu0 0.0
        %1104 = vmatprep.subr.mxu0 0.0
        %1105 = vmatpush1.msra.mxu0 0.0
        %1106 = vmatprep.subr.mxu0 0.0
        %1107 = vmatpush1.msra.mxu0 0.0
        %1108 = vmatprep.subr.mxu0 0.0
        %1109 = vmatpush1.msra.mxu0 0.0
        %1110 = vmatprep.subr.mxu0 0.0
        %1111 = vmatpush1.msra.mxu0 0.0
        %1112 = vmatprep.subr.mxu0 0.0
        %1113 = vmatpush1.msra.mxu0 0.0
        %1114 = vmatprep.subr.mxu0 0.0
        %1115 = vmatpush1.msra.mxu0 0.0
        %1116 = vmatprep.subr.mxu0 0.0
        %1117 = vmatpush1.msra.mxu0 0.0
        %1118 = vmatprep.subr.mxu0 0.0
        %1119 = vmatpush1.msra.mxu0 0.0
        %1120 = vmatprep.subr.mxu0 0.0
        %1121 = vmatpush1.msra.mxu0 0.0
        %1122 = vmatprep.subr.mxu0 0.0
        %1123 = vmatpush1.msra.mxu0 0.0
        %1124 = vmatprep.mubr.f32.mxu0 %v1058
        %1125 = vmatmul.mubr.f32.gmra.mrb[0].mxu0 %v1048
        %v1126 = vpop.f32.mrb[0].mxu0
        %v1127 = vadd.f32 %v1054, %v1126
        %v1128 = vpop.f32.mrb[0].mxu0
        %v1129 = vadd.f32 %v1054, %v1128
        %1130 = vdwg.mxu0
        %1131 = vmatprep.subr.mxu0 %v819
        %1132 = vmatpush1.msra.mxu0 %v818
        %1133 = vmatprep.subr.mxu0 %v823
        %1134 = vmatpush1.msra.mxu0 %v822
        %1135 = vmatprep.subr.mxu0 %v851
        %1136 = vmatpush1.msra.mxu0 %v850
        %1137 = vmatprep.subr.mxu0 %v855
        %1138 = vmatpush1.msra.mxu0 %v854
        %1139 = vmatprep.subr.mxu0 %v883
        %1140 = vmatpush1.msra.mxu0 %v882
        %1141 = vmatprep.subr.mxu0 %v887
        %1142 = vmatpush1.msra.mxu0 %v886
        %1143 = vmatprep.subr.mxu0 %v915
        %1144 = vmatpush1.msra.mxu0 %v914
        %1145 = vmatprep.subr.mxu0 %v919
        %1146 = vmatpush1.msra.mxu0 %v918
        %1147 = vmatprep.subr.mxu0 %v787
        %1148 = vmatpush1.msra.mxu0 %v786
        %1149 = vmatprep.subr.mxu0 %v791
        %1150 = vmatpush1.msra.mxu0 %v790
        %1151 = vmatprep.subr.mxu0 %v947
        %1152 = vmatpush1.msra.mxu0 %v946
        %1153 = vmatprep.subr.mxu0 %v951
        %1154 = vmatpush1.msra.mxu0 %v950
        %1155 = vmatprep.subr.mxu0 %v979
        %1156 = vmatpush1.msra.mxu0 %v978
        %1157 = vmatprep.subr.mxu0 %v983
        %1158 = vmatpush1.msra.mxu0 %v982
        %1159 = vmatprep.subr.mxu0 %v1011
        %1160 = vmatpush1.msra.mxu0 %v1010
        %1161 = vmatprep.subr.mxu0 %v1015
        %1162 = vmatpush1.msra.mxu0 %v1014
        %1163 = vmatprep.subr.mxu0 %v1043
        %1164 = vmatpush1.msra.mxu0 %v1042
        %1165 = vmatprep.subr.mxu0 %v1047
        %1166 = vmatpush1.msra.mxu0 %v1046
        %1167 = vmatprep.subr.mxu0 0.0
        %1168 = vmatpush1.msra.mxu0 0.0
        %1169 = vmatprep.subr.mxu0 0.0
        %1170 = vmatpush1.msra.mxu0 0.0
        %1171 = vmatprep.subr.mxu0 0.0
        %1172 = vmatpush1.msra.mxu0 0.0
        %1173 = vmatprep.subr.mxu0 0.0
        %1174 = vmatpush1.msra.mxu0 0.0
        %1175 = vmatprep.subr.mxu0 0.0
        %1176 = vmatpush1.msra.mxu0 0.0
        %1177 = vmatprep.subr.mxu0 0.0
        %1178 = vmatpush1.msra.mxu0 0.0
        %1179 = vmatprep.subr.mxu0 0.0
        %1180 = vmatpush1.msra.mxu0 0.0
        %1181 = vmatprep.subr.mxu0 0.0
        %1182 = vmatpush1.msra.mxu0 0.0
        %1183 = vmatprep.subr.mxu0 0.0
        %1184 = vmatpush1.msra.mxu0 0.0
        %1185 = vmatprep.subr.mxu0 0.0
        %1186 = vmatpush1.msra.mxu0 0.0
        %1187 = vmatprep.subr.mxu0 0.0
        %1188 = vmatpush1.msra.mxu0 0.0
        %1189 = vmatprep.subr.mxu0 0.0
        %1190 = vmatpush1.msra.mxu0 0.0
        %1191 = vmatprep.subr.mxu0 0.0
        %1192 = vmatpush1.msra.mxu0 0.0
        %1193 = vmatprep.subr.mxu0 0.0
        %1194 = vmatpush1.msra.mxu0 0.0
        %1195 = vmatprep.mubr.f32.mxu0 %v1058
        %1196 = vmatmul.mubr.f32.gmra.mrb[0].mxu0 %v1048
        %v1197 = vpop.f32.mrb[0].mxu0
        %v1198 = vadd.f32 %v1054, %v1197
        %v1199 = vpop.f32.mrb[0].mxu0
        %v1200 = vadd.f32 %v1054, %v1199
        %1201 = vdwg.mxu0
        %v1202 = vmax.f32 %v1127, 0.0
        %v1203 = vmax.f32 %v1129, 0.0
        %v1204 = vmax.f32 %v1198, 0.0
        %v1205 = vmax.f32 %v1200, 0.0
        %1206 = vrot.lane.b32.xlu0 %v1202, 17
        %v1207 = vpop.permute.xlu0 %1206
        %1208 = vrot.lane.b32.xlu0 %v1203, 17
        %v1209 = vpop.permute.xlu0 %1208
        %1210 = vrot.lane.b32.xlu0 %v1204, 17
        %v1211 = vpop.permute.xlu0 %1210
        %1212 = vrot.lane.b32.xlu0 %v1205, 17
        %v1213 = vpop.permute.xlu0 %1212
        %v1214 = vsel %vm353, %v1211, %v1213
        %v1215 = vsel %vm353, %v1209, %v1211
        %v1216 = vsel %vm353, %v1207, %v1209
        %v1217 = vsel %vm353, %v1213, %v1207
        %v1218 = vmul.f32 %v1217, %v361
        %v1219 = vmul.f32 %v1216, %v365
        %v1220 = vmul.f32 %v1215, %v369
        %v1221 = vmul.f32 %v1214, %v373
        %1222 = vrot.lane.b32.xlu0 %v1202, 16
        %v1223 = vpop.permute.xlu0 %1222
        %1224 = vrot.lane.b32.xlu0 %v1203, 16
        %v1225 = vpop.permute.xlu0 %1224
        %1226 = vrot.lane.b32.xlu0 %v1204, 16
        %v1227 = vpop.permute.xlu0 %1226
        %1228 = vrot.lane.b32.xlu0 %v1205, 16
        %v1229 = vpop.permute.xlu0 %1228
        %v1230 = vsel %vm386, %v1227, %v1229
        %v1231 = vsel %vm386, %v1225, %v1227
        %v1232 = vsel %vm386, %v1223, %v1225
        %v1233 = vsel %vm386, %v1229, %v1223
        %v1234 = vmul.f32 %v1233, %v394
        %v1235 = vmul.f32 %v1232, %v398
        %v1236 = vmul.f32 %v1231, %v402
        %v1237 = vmul.f32 %v1230, %v406
        %1238 = vrot.lane.b32.xlu0 %v1202, 15
        %v1239 = vpop.permute.xlu0 %1238
        %1240 = vrot.lane.b32.xlu0 %v1203, 15
        %v1241 = vpop.permute.xlu0 %1240
        %1242 = vrot.lane.b32.xlu0 %v1204, 15
        %v1243 = vpop.permute.xlu0 %1242
        %1244 = vrot.lane.b32.xlu0 %v1205, 15
        %v1245 = vpop.permute.xlu0 %1244
        %v1246 = vsel %vm419, %v1243, %v1245
        %v1247 = vsel %vm419, %v1241, %v1243
        %v1248 = vsel %vm419, %v1239, %v1241
        %v1249 = vsel %vm419, %v1245, %v1239
        %v1250 = vmul.f32 %v1249, %v427
        %v1251 = vmul.f32 %v1248, %v431
        %v1252 = vmul.f32 %v1247, %v435
        %v1253 = vmul.f32 %v1246, %v439
        %1254 = vrot.lane.b32.xlu0 %v1202, 1
        %v1255 = vpop.permute.xlu0 %1254
        %1256 = vrot.lane.b32.xlu0 %v1203, 1
        %v1257 = vpop.permute.xlu0 %1256
        %1258 = vrot.lane.b32.xlu0 %v1204, 1
        %v1259 = vpop.permute.xlu0 %1258
        %1260 = vrot.lane.b32.xlu0 %v1205, 1
        %v1261 = vpop.permute.xlu0 %1260
        %v1262 = vsel %vm452, %v1259, %v1261
        %v1263 = vsel %vm452, %v1257, %v1259
        %v1264 = vsel %vm452, %v1255, %v1257
        %v1265 = vsel %vm452, %v1261, %v1255
        %v1266 = vmul.f32 %v1265, %v460
        %v1267 = vmul.f32 %v1264, %v464
        %v1268 = vmul.f32 %v1263, %v468
        %v1269 = vmul.f32 %v1262, %v472
        %1270 = vrot.lane.b32.xlu0 %v1202, 127
        %v1271 = vpop.permute.xlu0 %1270
        %1272 = vrot.lane.b32.xlu0 %v1203, 127
        %v1273 = vpop.permute.xlu0 %1272
        %1274 = vrot.lane.b32.xlu0 %v1204, 127
        %v1275 = vpop.permute.xlu0 %1274
        %1276 = vrot.lane.b32.xlu0 %v1205, 127
        %v1277 = vpop.permute.xlu0 %1276
        %v1278 = vsel %vm485, %v1275, %v1277
        %v1279 = vsel %vm485, %v1273, %v1275
        %v1280 = vsel %vm485, %v1271, %v1273
        %v1281 = vsel %vm485, %v1277, %v1271
        %v1282 = vmul.f32 %v1280, %v493
        %v1283 = vmul.f32 %v1279, %v497
        %v1284 = vmul.f32 %v1278, %v501
        %v1285 = vmul.f32 %v1281, %v505
        %1286 = vrot.lane.b32.xlu0 %v1202, 113
        %v1287 = vpop.permute.xlu0 %1286
        %1288 = vrot.lane.b32.xlu0 %v1203, 113
        %v1289 = vpop.permute.xlu0 %1288
        %1290 = vrot.lane.b32.xlu0 %v1204, 113
        %v1291 = vpop.permute.xlu0 %1290
        %1292 = vrot.lane.b32.xlu0 %v1205, 113
        %v1293 = vpop.permute.xlu0 %1292
        %v1294 = vsel %vm518, %v1291, %v1293
        %v1295 = vsel %vm518, %v1289, %v1291
        %v1296 = vsel %vm518, %v1287, %v1289
        %v1297 = vsel %vm518, %v1293, %v1287
        %v1298 = vmul.f32 %v1296, %v526
        %v1299 = vmul.f32 %v1295, %v530
        %v1300 = vmul.f32 %v1294, %v534
        %v1301 = vmul.f32 %v1297, %v538
        %1302 = vrot.lane.b32.xlu0 %v1202, 112
        %v1303 = vpop.permute.xlu0 %1302
        %1304 = vrot.lane.b32.xlu0 %v1203, 112
        %v1305 = vpop.permute.xlu0 %1304
        %1306 = vrot.lane.b32.xlu0 %v1204, 112
        %v1307 = vpop.permute.xlu0 %1306
        %1308 = vrot.lane.b32.xlu0 %v1205, 112
        %v1309 = vpop.permute.xlu0 %1308
        %v1310 = vsel %vm551, %v1307, %v1309
        %v1311 = vsel %vm551, %v1305, %v1307
        %v1312 = vsel %vm551, %v1303, %v1305
        %v1313 = vsel %vm551, %v1309, %v1303
        %v1314 = vmul.f32 %v1312, %v559
        %v1315 = vmul.f32 %v1311, %v563
        %v1316 = vmul.f32 %v1310, %v567
        %v1317 = vmul.f32 %v1313, %v571
        %1318 = vrot.lane.b32.xlu0 %v1202, 111
        %v1319 = vpop.permute.xlu0 %1318
        %1320 = vrot.lane.b32.xlu0 %v1203, 111
        %v1321 = vpop.permute.xlu0 %1320
        %1322 = vrot.lane.b32.xlu0 %v1204, 111
        %v1323 = vpop.permute.xlu0 %1322
        %1324 = vrot.lane.b32.xlu0 %v1205, 111
        %v1325 = vpop.permute.xlu0 %1324
        %v1326 = vsel %vm584, %v1323, %v1325
        %v1327 = vsel %vm584, %v1321, %v1323
        %v1328 = vsel %vm584, %v1319, %v1321
        %v1329 = vsel %vm584, %v1325, %v1319
        %v1330 = vmul.f32 %v1328, %v592
        %v1331 = vmul.f32 %v1327, %v596
        %v1332 = vmul.f32 %v1326, %v600
        %v1333 = vmul.f32 %v1329, %v604
        %v1334 = vld [vmem:[%s6] sm:$0xff]
        %v1335 = vld [vmem:[%s6 + $0x8] sm:$0xff]
        %v1336 = vld [vmem:[%s7] sm:$0xff]
        %v1337 = vld [vmem:[%s7 + $0x8] sm:$0xff]
        %1339 = vset.pattern.permute.xlu0 0
        %1340 = vperm.xlu0 %1339, %v1336
        %v1341 = vpop.permute.xlu0 %1340
        %1344 = vset.pattern.permute.xlu0 0
        %1345 = vperm.xlu0 %1344, %v1337
        %v1346 = vpop.permute.xlu0 %1345
        %v1349 = vsel %vm623, %v1334, 0
        %v1352 = vsel %vm623, %v1335, 0
        %1354 = vmatprep.subr.mxu0 %v1219
        %1355 = vmatpush1.msra.mxu0 %v1218
        %1356 = vmatprep.subr.mxu0 %v1235
        %1357 = vmatpush1.msra.mxu0 %v1234
        %1358 = vmatprep.subr.mxu0 %v1251
        %1359 = vmatpush1.msra.mxu0 %v1250
        %1360 = vmatprep.subr.mxu0 %v1267
        %1361 = vmatpush1.msra.mxu0 %v1266
        %1362 = vmatprep.subr.mxu0 %v1203
        %1363 = vmatpush1.msra.mxu0 %v1202
        %1364 = vmatprep.subr.mxu0 %v1283
        %1365 = vmatpush1.msra.mxu0 %v1282
        %1366 = vmatprep.subr.mxu0 %v1299
        %1367 = vmatpush1.msra.mxu0 %v1298
        %1368 = vmatprep.subr.mxu0 %v1315
        %1369 = vmatpush1.msra.mxu0 %v1314
        %1370 = vmatprep.subr.mxu0 %v1331
        %1371 = vmatpush1.msra.mxu0 %v1330
        %1372 = vmatprep.subr.mxu0 0.0
        %1373 = vmatpush1.msra.mxu0 0.0
        %1374 = vmatprep.subr.mxu0 0.0
        %1375 = vmatpush1.msra.mxu0 0.0
        %1376 = vmatprep.subr.mxu0 0.0
        %1377 = vmatpush1.msra.mxu0 0.0
        %1378 = vmatprep.subr.mxu0 0.0
        %1379 = vmatpush1.msra.mxu0 0.0
        %1380 = vmatprep.subr.mxu0 0.0
        %1381 = vmatpush1.msra.mxu0 0.0
        %1382 = vmatprep.subr.mxu0 0.0
        %1383 = vmatpush1.msra.mxu0 0.0
        %1384 = vmatprep.subr.mxu0 0.0
        %1385 = vmatpush1.msra.mxu0 0.0
        %1386 = vmatprep.subr.mxu0 0.0
        %1387 = vmatpush1.msra.mxu0 0.0
        %1388 = vmatprep.subr.mxu0 0.0
        %1389 = vmatpush1.msra.mxu0 0.0
        %1390 = vmatprep.subr.mxu0 0.0
        %1391 = vmatpush1.msra.mxu0 0.0
        %1392 = vmatprep.subr.mxu0 0.0
        %1393 = vmatpush1.msra.mxu0 0.0
        %1394 = vmatprep.subr.mxu0 0.0
        %1395 = vmatpush1.msra.mxu0 0.0
        %1396 = vmatprep.subr.mxu0 0.0
        %1397 = vmatpush1.msra.mxu0 0.0
        %1398 = vmatprep.subr.mxu0 0.0
        %1399 = vmatpush1.msra.mxu0 0.0
        %1400 = vmatprep.subr.mxu0 0.0
        %1401 = vmatpush1.msra.mxu0 0.0
        %1402 = vmatprep.subr.mxu0 0.0
        %1403 = vmatpush1.msra.mxu0 0.0
        %1404 = vmatprep.subr.mxu0 0.0
        %1405 = vmatpush1.msra.mxu0 0.0
        %1406 = vmatprep.subr.mxu0 0.0
        %1407 = vmatpush1.msra.mxu0 0.0
        %1408 = vmatprep.subr.mxu0 0.0
        %1409 = vmatpush1.msra.mxu0 0.0
        %1410 = vmatprep.subr.mxu0 0.0
        %1411 = vmatpush1.msra.mxu0 0.0
        %1412 = vmatprep.subr.mxu0 0.0
        %1413 = vmatpush1.msra.mxu0 0.0
        %1414 = vmatprep.subr.mxu0 0.0
        %1415 = vmatpush1.msra.mxu0 0.0
        %1416 = vmatprep.subr.mxu0 0.0
        %1417 = vmatpush1.msra.mxu0 0.0
        %1418 = vmatprep.mubr.f32.mxu0 0.0
        %1419 = vmatmul.mubr.f32.gmra.mrb[0].mxu0 %v1349
        %v1420 = vpop.f32.mrb[0].mxu0
        %v1421 = vadd.f32 %v1341, %v1420
        %v1422 = vpop.f32.mrb[0].mxu0
        %v1423 = vadd.f32 %v1341, %v1422
        %1424 = vmatprep.mubr.f32.mxu0 0.0
        %1425 = vmatmul.mubr.f32.gmra.mrb[0].mxu0 %v1352
        %v1426 = vpop.f32.mrb[0].mxu0
        %v1427 = vadd.f32 %v1346, %v1426
        %v1428 = vpop.f32.mrb[0].mxu0
        %v1429 = vadd.f32 %v1346, %v1428
        %1430 = vdwg.mxu0
        %1431 = vmatprep.subr.mxu0 %v1221
        %1432 = vmatpush1.msra.mxu0 %v1220
        %1433 = vmatprep.subr.mxu0 %v1237
        %1434 = vmatpush1.msra.mxu0 %v1236
        %1435 = vmatprep.subr.mxu0 %v1253
        %1436 = vmatpush1.msra.mxu0 %v1252
        %1437 = vmatprep.subr.mxu0 %v1269
        %1438 = vmatpush1.msra.mxu0 %v1268
        %1439 = vmatprep.subr.mxu0 %v1205
        %1440 = vmatpush1.msra.mxu0 %v1204
        %1441 = vmatprep.subr.mxu0 %v1285
        %1442 = vmatpush1.msra.mxu0 %v1284
        %1443 = vmatprep.subr.mxu0 %v1301
        %1444 = vmatpush1.msra.mxu0 %v1300
        %1445 = vmatprep.subr.mxu0 %v1317
        %1446 = vmatpush1.msra.mxu0 %v1316
        %1447 = vmatprep.subr.mxu0 %v1333
        %1448 = vmatpush1.msra.mxu0 %v1332
        %1449 = vmatprep.subr.mxu0 0.0
        %1450 = vmatpush1.msra.mxu0 0.0
        %1451 = vmatprep.subr.mxu0 0.0
        %1452 = vmatpush1.msra.mxu0 0.0
        %1453 = vmatprep.subr.mxu0 0.0
        %1454 = vmatpush1.msra.mxu0 0.0
        %1455 = vmatprep.subr.mxu0 0.0
        %1456 = vmatpush1.msra.mxu0 0.0
        %1457 = vmatprep.subr.mxu0 0.0
        %1458 = vmatpush1.msra.mxu0 0.0
        %1459 = vmatprep.subr.mxu0 0.0
        %1460 = vmatpush1.msra.mxu0 0.0
        %1461 = vmatprep.subr.mxu0 0.0
        %1462 = vmatpush1.msra.mxu0 0.0
        %1463 = vmatprep.subr.mxu0 0.0
        %1464 = vmatpush1.msra.mxu0 0.0
        %1465 = vmatprep.subr.mxu0 0.0
        %1466 = vmatpush1.msra.mxu0 0.0
        %1467 = vmatprep.subr.mxu0 0.0
        %1468 = vmatpush1.msra.mxu0 0.0
        %1469 = vmatprep.subr.mxu0 0.0
        %1470 = vmatpush1.msra.mxu0 0.0
        %1471 = vmatprep.subr.mxu0 0.0
        %1472 = vmatpush1.msra.mxu0 0.0
        %1473 = vmatprep.subr.mxu0 0.0
        %1474 = vmatpush1.msra.mxu0 0.0
        %1475 = vmatprep.subr.mxu0 0.0
        %1476 = vmatpush1.msra.mxu0 0.0
        %1477 = vmatprep.subr.mxu0 0.0
        %1478 = vmatpush1.msra.mxu0 0.0
        %1479 = vmatprep.subr.mxu0 0.0
        %1480 = vmatpush1.msra.mxu0 0.0
        %1481 = vmatprep.subr.mxu0 0.0
        %1482 = vmatpush1.msra.mxu0 0.0
        %1483 = vmatprep.subr.mxu0 0.0
        %1484 = vmatpush1.msra.mxu0 0.0
        %1485 = vmatprep.subr.mxu0 0.0
        %1486 = vmatpush1.msra.mxu0 0.0
        %1487 = vmatprep.subr.mxu0 0.0
        %1488 = vmatpush1.msra.mxu0 0.0
        %1489 = vmatprep.subr.mxu0 0.0
        %1490 = vmatpush1.msra.mxu0 0.0
        %1491 = vmatprep.subr.mxu0 0.0
        %1492 = vmatpush1.msra.mxu0 0.0
        %1493 = vmatprep.subr.mxu0 0.0
        %1494 = vmatpush1.msra.mxu0 0.0
        %1495 = vmatprep.mubr.f32.mxu0 0.0
        %1496 = vmatmul.mubr.f32.gmra.mrb[0].mxu0 %v1349
        %v1497 = vpop.f32.mrb[0].mxu0
        %v1498 = vadd.f32 %v1341, %v1497
        %v1499 = vpop.f32.mrb[0].mxu0
        %v1500 = vadd.f32 %v1341, %v1499
        %1501 = vmatprep.mubr.f32.mxu0 0.0
        %1502 = vmatmul.mubr.f32.gmra.mrb[0].mxu0 %v1352
        %v1503 = vpop.f32.mrb[0].mxu0
        %v1504 = vadd.f32 %v1346, %v1503
        %v1505 = vpop.f32.mrb[0].mxu0
        %v1506 = vadd.f32 %v1346, %v1505
        %1507 = vdwg.mxu0
        %v1508 = vmax.f32 %v1421, 0.0
        %v1509 = vmax.f32 %v1423, 0.0
        %v1510 = vmax.f32 %v1498, 0.0
        %v1511 = vmax.f32 %v1500, 0.0
        %v1512 = vmax.f32 %v1427, 0.0
        %v1513 = vmax.f32 %v1429, 0.0
        %v1514 = vmax.f32 %v1504, 0.0
        %v1515 = vmax.f32 %v1506, 0.0
        %1516 = vst [vmem:[%s334] sm:$0xff] %v1508
        %1517 = vst [vmem:[%s334 + $0x8] sm:$0xff] %v1509
        %1518 = vst [vmem:[%s334 + $0x10] sm:$0xff] %v1510
        %1519 = vst [vmem:[%s334 + $0x18] sm:$0xff] %v1511
        %1520 = vst [vmem:[%s334 + $0x20] sm:$0xff] %v1512
        %1521 = vst [vmem:[%s334 + $0x28] sm:$0xff] %v1513
        %1522 = vst [vmem:[%s334 + $0x30] sm:$0xff] %v1514
        %1523 = vst [vmem:[%s334 + $0x38] sm:$0xff] %v1515
        %s1524 = sand.u32 %s207, 1
        %s1525 = scalar_lea.sflag [#allocation4], %s1524
        %s1526 = sand.u32 %s207, 1
        %s1527 = smul.addr %s1526, 64
        %s1528 = scalar_lea.vmem [#allocation7], %s1527
        // Predicated region
        $region61: #{tpu_custom_call.1} parent=51 // pred_check
          %p1529 = pneg %p217
        $region62: #{tpu_custom_call.1} parent=51 // pred_check_branch
          %1531 = sbr.rel (%p1529) target = $region64
        $region63: #{tpu_custom_call.1} parent=51 // pred_region
          %s1533 = ssub.s32 1024, 1024
          %1534 = vsyncadd %s1525, %s1533
          %s1535 = smul.addr %s26, 8
          %s1536 = smul.addr %s1535, 128
          %s1537 = scalar_lea.hbm %s8, %s1536
          %s1538 = sshll.u32 %s1528, 4
          %s1539 = int_to_ptr.vmem [resolvable:$true] %s1538
          %1544 = dma.vmem_to_hbm [thread:$0]  %s1539, 1024, %s1537, %s1525, 512, 512, 32
        $region64: #{tpu_custom_call.1} parent=51 // pred_fallthru
          _
      $region52: #{tpu_custom_call.1} parent=5 // pred_fallthru
        _
      %p1545 = scmp.le.s32.totalorder 2, %s21
      // Predicated region
      $region65: #{tpu_custom_call.1} parent=5 // pred_check
        %p1546 = pneg %p1545
      $region66: #{tpu_custom_call.1} parent=5 // pred_check_branch
        %1548 = sbr.rel (%p1546) target = $region68
      $region67: #{tpu_custom_call.1} parent=5 // pred_region
        %s1549 = ssub.s32 %s21, 2
        // Predicated region
        $region69: #{tpu_custom_call.1} parent=67 // pred_check
          %p1550 = pneg %p223
        $region70: #{tpu_custom_call.1} parent=67 // pred_check_branch
          %1552 = sbr.rel (%p1550) target = $region72
        $region71: #{tpu_custom_call.1} parent=67 // pred_region
          %s1553 = sand.u32 %s208, 1
          %s1554 = scalar_lea.sflag [#allocation4], %s1553
          %s1555 = sand.u32 %s208, 1
          %s1556 = smul.addr %s1555, 64
          %s1557 = scalar_lea.vmem [#allocation7], %s1556
          %1558 = dma.done %s1554, 1024
        $region72: #{tpu_custom_call.1} parent=67 // pred_fallthru
          _
      $region68: #{tpu_custom_call.1} parent=5 // pred_fallthru
        _
    $region6: #{tpu_custom_call.1} parent=1 // loop_footer
      %s25 = sadd.s32 1, %s21
    $region7: #{tpu_custom_call.1} parent=1 // loop_footer_branch
      %20 = sbr.rel target = $region3
    $region8: #{tpu_custom_call.1} parent=1 // loop_exit
      _
    %1559 = vsyncpa [#allocation3], 1
    %s1560 = scalar_lea.sflag [#allocation3], 1
    %1561 = vsyncpa %s1560, 1
    %1562 = vsyncpa [#allocation6], 1
    %1563 = vsyncpa [#allocation4], 1
    %s1564 = scalar_lea.sflag [#allocation4], 1
    %1565 = vsyncpa %s1564, 1

</llo_original>
